<compile_context>
chip_gen: v7x
topology: tpu7x:2x2x1
jax: 0.10.0
libtpu: 0.0.40
codegen_flags: <defaults>
</compile_context>

<pallas_src>
import math

import jax
import jax.numpy as jnp
from jax import lax
from jax.experimental import pallas as pl
from jax.experimental.pallas import tpu as pltpu

_INV_SQRT2 = 1.0 / math.sqrt(2.0)


def _round_up(x, m):
    return ((x + m - 1) // m) * m


# ----------------------------------------------------------------------------
# Pallas kernel: fused 2-layer MLP  out = GELU(x @ W1 + b1) @ W2 + b2
# Single pass over the hidden dimension (no reduction grid, no accumulator).
# The only grid axis tiles the output columns N and is "parallel" so v7x's
# two TensorCores each stream half of W2 (W1/x/b1 are block-resident).
# ----------------------------------------------------------------------------
def _mlp_kernel(x_ref, w1_ref, b1_ref, w2_ref, b2_ref, o_ref):
    # x, w1 are bf16 (or f32) -> f32 accumulation on the MXU.
    h = jnp.dot(x_ref[...], w1_ref[...], preferred_element_type=jnp.float32)
    h = h + b1_ref[...]
    # exact GELU (torch.nn.GELU default): 0.5 * x * (1 + erf(x / sqrt(2)))
    # kept entirely in f32 (v5e has no bf16 VPU/EUP path).
    h = 0.5 * h * (1.0 + lax.erf(h * _INV_SQRT2))
    out = jnp.dot(h, w2_ref[...].astype(jnp.float32),
                  preferred_element_type=jnp.float32)
    o_ref[...] = (out + b2_ref[...]).astype(o_ref.dtype)


def mlp_pallas(x, w1, b1, w2, b2, *, tile_n=None):
    """x: (M, D); w1: (D, H); b1: (1, H) f32; w2: (H, N); b2: (1, N) f32."""
    M, D = x.shape
    H = w1.shape[1]
    N = w2.shape[1]

    if tile_n is None:
        # Split N in two for v7x megacore when possible; otherwise one step.
        tile_n = N // 2 if (N % 256 == 0 and N >= 256) else N

    assert M % 8 == 0 and D % 128 == 0 and N % 128 == 0
    assert N % tile_n == 0 and tile_n % 128 == 0

    return pl.pallas_call(
        _mlp_kernel,
        out_shape=jax.ShapeDtypeStruct((M, N), jnp.float32),
        grid_spec=pltpu.PrefetchScalarGridSpec(
            num_scalar_prefetch=0,
            grid=(N // tile_n,),
            in_specs=[
                pl.BlockSpec((M, D), lambda j: (0, 0)),        # x (resident)
                pl.BlockSpec((D, H), lambda j: (0, 0)),        # W1 (resident)
                pl.BlockSpec((1, H), lambda j: (0, 0)),        # b1 (resident)
                pl.BlockSpec((H, tile_n), lambda j: (0, j)),   # W2 column tile
                pl.BlockSpec((1, tile_n), lambda j: (0, j)),   # b2 column tile
            ],
            out_specs=pl.BlockSpec((M, tile_n), lambda j: (0, j)),
        ),
        compiler_params=pltpu.CompilerParams(
            dimension_semantics=("parallel",),
        ),
    )(x, w1, b1, w2, b2)


# ----------------------------------------------------------------------------
# One-time parameter preparation (hoisted out of the per-call path):
# pad D to a lane multiple, pad N to a lane multiple, cast weights to bf16.
# ----------------------------------------------------------------------------
def prepare_pose_encoder_params(w1, b1, w2, b2, *, param_dtype=jnp.bfloat16):
    """w1: (d_in, H); b1: (H,); w2: (H, N); b2: (N,)  (weights stored (in, out))."""
    D, H = w1.shape
    N = w2.shape[1]
    Dp = _round_up(D, 128)
    Np = _round_up(N, 128)

    w1p = jnp.zeros((Dp, H), param_dtype).at[:D, :].set(w1.astype(param_dtype))
    w2p = jnp.zeros((H, Np), param_dtype).at[:, :N].set(w2.astype(param_dtype))
    b1p = jnp.asarray(b1, jnp.float32).reshape(1, H)
    b2p = (jnp.zeros((1, Np), jnp.float32)
           .at[0, :N].set(jnp.asarray(b2, jnp.float32).reshape(-1)))

    return {
        "w1": w1p, "b1": b1p, "w2": w2p, "b2": b2p,
        "d_in": D, "out_dim": N, "param_dtype": param_dtype,
    }


# ----------------------------------------------------------------------------
# Plain-JAX glue: camera -> 7-D pose encoding -> 147-D harmonic embedding.
# These are tiny (B x 7 / B x 147) elementwise ops with an argmax-select.
# ----------------------------------------------------------------------------
def _sqrt_positive_part(x):
    return jnp.where(x > 0, jnp.sqrt(jnp.maximum(x, 0.0)), 0.0)


def standardize_quaternion(q):
    # Matches the provided reference: F.normalize(p=2, dim=-1) (eps=1e-12),
    # then flip sign so the real part is non-negative.
    norm = jnp.linalg.norm(q, axis=-1, keepdims=True)
    q = q / jnp.maximum(norm, 1e-12)
    return jnp.where(q[..., 0:1] < 0, -q, q)


def matrix_to_quaternion(matrix):
    batch_dim = matrix.shape[:-2]
    m = matrix.reshape(batch_dim + (9,))
    m00, m01, m02, m10, m11, m12, m20, m21, m22 = [m[..., i] for i in range(9)]
    q_abs = _sqrt_positive_part(
        jnp.stack(
            [
                1.0 + m00 + m11 + m22,
                1.0 + m00 - m11 - m22,
                1.0 - m00 + m11 - m22,
                1.0 - m00 - m11 + m22,
            ],
            axis=-1,
        )
    )
    quat_by_rijk = jnp.stack(
        [
            jnp.stack([q_abs[..., 0] ** 2, m21 - m12, m02 - m20, m10 - m01], axis=-1),
            jnp.stack([m21 - m12, q_abs[..., 1] ** 2, m10 + m01, m02 + m20], axis=-1),
            jnp.stack([m02 - m20, m10 + m01, q_abs[..., 2] ** 2, m12 + m21], axis=-1),
            jnp.stack([m10 - m01, m20 + m02, m21 + m12, q_abs[..., 3] ** 2], axis=-1),
        ],
        axis=-2,
    )
    quat_candidates = quat_by_rijk / (2.0 * jnp.maximum(q_abs[..., None], 0.1))
    idx = jnp.argmax(q_abs, axis=-1)
    out = jnp.take_along_axis(quat_candidates, idx[..., None, None], axis=-2)[..., 0, :]
    return standardize_quaternion(out)


def camera_to_pose_encoding(camera):
    # 'absT_quaR': [translation (3), quaternion(R) wxyz (4)]
    quat = matrix_to_quaternion(camera[:, :3, :3])
    return jnp.concatenate([camera[:, :3, 3], quat], axis=-1)


def postprocess_pose_inverse(pose_enc):
    # postprocess_pose(pose_enc, ('exp', -inf, inf), inverse=True):
    # translation -> sign(t) * log1p(|t|)  (inverse of sign(t) * expm1(|t|));
    # quaternion part passes through.
    # TODO(synk): postprocess_pose source is not shipped with the module; this
    # is the standard CUT3R 'exp' inverse mapping on the translation only.
    trans = pose_enc[..., :3]
    quat = pose_enc[..., 3:]
    trans = jnp.sign(trans) * jnp.log1p(jnp.abs(trans))
    return jnp.concatenate([trans, quat], axis=-1)


def harmonic_embedding(x, n_harmonic_functions=10, omega_0=1.0):
    # HarmonicEmbedding(logspace=True, append_input=True)
    freqs = (2.0 ** jnp.arange(n_harmonic_functions, dtype=jnp.float32)) * omega_0
    zero_half_pi = jnp.array([0.0, 0.5 * jnp.pi], dtype=jnp.float32)
    embed = x[..., None] * freqs                                    # (..., D, F)
    embed = embed[..., None, :, :] + zero_half_pi[..., None, None]  # (..., 2, D, F)
    embed = jnp.sin(embed)
    embed = embed.reshape(*x.shape[:-1], -1)                        # (..., 2*D*F)
    return jnp.concatenate([embed, x], axis=-1)                     # append_input


def pose_encoder_forward(camera, params, *, tile_n=None):
    pose_enc = camera_to_pose_encoding(camera).astype(camera.dtype)   # (B, 7)
    pose_enc = postprocess_pose_inverse(pose_enc)                     # (B, 7)
    feat = harmonic_embedding(pose_enc)                               # (B, 147)

    B, D = feat.shape
    assert D == params["d_in"]
    Dp = params["w1"].shape[0]
    M = _round_up(max(B, 1), 8)                 # pad rows to sublane multiple

    x = (jnp.zeros((M, Dp), params["param_dtype"])
         .at[:B, :D].set(feat.astype(params["param_dtype"])))

    out = mlp_pallas(x, params["w1"], params["b1"], params["w2"], params["b2"],
                     tile_n=tile_n)
    return out[:B, :params["out_dim"]]


# ----------------------------------------------------------------------------
def _quat_to_rotmat(q):
    w, x, y, z = q[..., 0], q[..., 1], q[..., 2], q[..., 3]
    return jnp.stack(
        [
            jnp.stack([1 - 2 * (y * y + z * z), 2 * (x * y - w * z), 2 * (x * z + w * y)], -1),
            jnp.stack([2 * (x * y + w * z), 1 - 2 * (x * x + z * z), 2 * (y * z - w * x)], -1),
            jnp.stack([2 * (x * z - w * y), 2 * (y * z + w * x), 1 - 2 * (x * x + y * y)], -1),
        ],
        axis=-2,
    )


if __name__ == "__main__":
    key = jax.random.PRNGKey(0)
    B = 2
    hidden_size = 256          # SMALL stand-in for the default 768
    mlp_ratio = 4
    n_harm = 10
    target_dim = 7
    d_in = target_dim * (2 * n_harm + 1)     # 147
    H = hidden_size * mlp_ratio              # 1024

    k1, k2, k3, k4, k5, k6 = jax.random.split(key, 6)

    # Build valid cam2world matrices: random rotation + translation.
    q = jax.random.normal(k1, (B, 4), jnp.float32)
    q = q / jnp.linalg.norm(q, axis=-1, keepdims=True)
    R = _quat_to_rotmat(q)
    t = jax.random.normal(k2, (B, 3), jnp.float32)
    camera = (
        jnp.zeros((B, 4, 4), jnp.float32)
        .at[:, :3, :3].set(R)
        .at[:, :3, 3].set(t)
        .at[:, 3, 3].set(1.0)
    )

    # Deterministic synthetic MLP parameters (stored (in, out); biases 1-D).
    w1 = jax.random.normal(k3, (d_in, H), jnp.float32) * (1.0 / math.sqrt(d_in))
    b1 = jax.random.normal(k4, (H,), jnp.float32) * 0.01
    w2 = jax.random.normal(k5, (H, hidden_size), jnp.float32) * (1.0 / math.sqrt(H))
    b2 = jax.random.normal(k6, (hidden_size,), jnp.float32) * 0.01

    # One-time prep: pad to lane multiples + cast to bf16 (out of hot path).
    params = prepare_pose_encoder_params(w1, b1, w2, b2, param_dtype=jnp.bfloat16)

    out = pose_encoder_forward(camera, params)
    out = jax.block_until_ready(out)
    assert out.shape == (B, hidden_size) and out.dtype == jnp.float32
    print("KERNEL_OK")
</pallas_src>

<mosaic_0001>
module attributes {stable_mosaic.version = 11 : i64} {
  func.func @_mlp_kernel(%arg0: i32, %arg1: memref<8x256xbf16, #tpu.memory_space<vmem>>, %arg2: memref<256x1024xbf16, #tpu.memory_space<vmem>>, %arg3: memref<1x1024xf32, #tpu.memory_space<vmem>>, %arg4: memref<1024x128xbf16, #tpu.memory_space<vmem>>, %arg5: memref<1x128xf32, #tpu.memory_space<vmem>>, %arg6: memref<8x128xf32, #tpu.memory_space<vmem>>) attributes {dimension_semantics = [#tpu.dimension_semantics<parallel>], iteration_bounds = array<i64: 2>, scalar_prefetch = 0 : i64, scratch_operands = 0 : i64, tpu.core_type = #tpu.core_type<tc>, window_params = [{pipeline_mode = #tpu.pipeline_mode<synchronous>, transform_indices = @transform_0, window_bounds = array<i64: 8, 256>}, {pipeline_mode = #tpu.pipeline_mode<synchronous>, transform_indices = @transform_1, window_bounds = array<i64: 256, 1024>}, {pipeline_mode = #tpu.pipeline_mode<synchronous>, transform_indices = @transform_2, window_bounds = array<i64: 1, 1024>}, {transform_indices = @transform_3, window_bounds = array<i64: 1024, 128>}, {transform_indices = @transform_4, window_bounds = array<i64: 1, 128>}, {transform_indices = @transform_5, window_bounds = array<i64: 8, 128>}]} {
    %c0 = arith.constant 0 : index
    %c0_0 = arith.constant 0 : index
    %0 = vector.load %arg1[%c0, %c0_0] : memref<8x256xbf16, #tpu.memory_space<vmem>>, vector<8x256xbf16>
    %c0_1 = arith.constant 0 : index
    %c0_2 = arith.constant 0 : index
    %1 = vector.load %arg2[%c0_1, %c0_2] : memref<256x1024xbf16, #tpu.memory_space<vmem>>, vector<256x1024xbf16>
    %cst = arith.constant dense<0.000000e+00> : vector<8x1024xf32>
    %2 = tpu.matmul %0, %1, %cst {dimension_numbers = #tpu.dot_dimension_numbers<[1], [0], [0], [1], [0, 0, 1, 1], [], []>} : vector<8x256xbf16>, vector<256x1024xbf16>, vector<8x1024xf32> -> vector<8x1024xf32>
    %c0_3 = arith.constant 0 : index
    %c0_4 = arith.constant 0 : index
    %3 = vector.load %arg3[%c0_3, %c0_4] : memref<1x1024xf32, #tpu.memory_space<vmem>>, vector<1x1024xf32>
    %4 = vector.broadcast %3 : vector<1x1024xf32> to vector<8x1024xf32>
    %5 = arith.addf %2, %4 : vector<8x1024xf32>
    %cst_5 = arith.constant 5.000000e-01 : f32
    %6 = vector.broadcast %cst_5 : f32 to vector<8x1024xf32>
    %7 = arith.mulf %6, %5 : vector<8x1024xf32>
    %cst_6 = arith.constant 0.707106769 : f32
    %8 = vector.broadcast %cst_6 : f32 to vector<8x1024xf32>
    %9 = arith.mulf %5, %8 : vector<8x1024xf32>
    %10 = math.erf %9 : vector<8x1024xf32>
    %cst_7 = arith.constant 1.000000e+00 : f32
    %11 = vector.broadcast %cst_7 : f32 to vector<8x1024xf32>
    %12 = arith.addf %11, %10 : vector<8x1024xf32>
    %13 = arith.mulf %7, %12 : vector<8x1024xf32>
    %c0_8 = arith.constant 0 : index
    %c0_9 = arith.constant 0 : index
    %14 = vector.load %arg4[%c0_8, %c0_9] : memref<1024x128xbf16, #tpu.memory_space<vmem>>, vector<1024x128xbf16>
    %15 = arith.extf %14 : vector<1024x128xbf16> to vector<1024x128xf32>
    %cst_10 = arith.constant dense<0.000000e+00> : vector<8x128xf32>
    %16 = tpu.matmul %13, %15, %cst_10 {dimension_numbers = #tpu.dot_dimension_numbers<[1], [0], [0], [1], [0, 0, 1, 1], [], []>} : vector<8x1024xf32>, vector<1024x128xf32>, vector<8x128xf32> -> vector<8x128xf32>
    %c0_11 = arith.constant 0 : index
    %c0_12 = arith.constant 0 : index
    %17 = vector.load %arg5[%c0_11, %c0_12] : memref<1x128xf32, #tpu.memory_space<vmem>>, vector<1x128xf32>
    %18 = vector.broadcast %17 : vector<1x128xf32> to vector<8x128xf32>
    %19 = arith.addf %16, %18 : vector<8x128xf32>
    %c0_13 = arith.constant 0 : index
    %c0_14 = arith.constant 0 : index
    %20 = vector.load %arg6[%c0_13, %c0_14] : memref<8x128xf32, #tpu.memory_space<vmem>>, vector<8x128xf32>
    tpu.vector_store %arg6[%c0_13, %c0_14], %19 {strides = array<i32>} : memref<8x128xf32, #tpu.memory_space<vmem>>, vector<8x128xf32>,
    return
  }
  func.func @transform_0(%arg0: i32) -> (i32, i32) {
    %c0_i32 = arith.constant 0 : i32
    %c0_i32_0 = arith.constant 0 : i32
    %c0_i32_1 = arith.constant 0 : i32
    return %c0_i32, %c0_i32_0 : i32, i32
  }
  func.func @transform_1(%arg0: i32) -> (i32, i32) {
    %c0_i32 = arith.constant 0 : i32
    %c0_i32_0 = arith.constant 0 : i32
    %c0_i32_1 = arith.constant 0 : i32
    return %c0_i32, %c0_i32_0 : i32, i32
  }
  func.func @transform_2(%arg0: i32) -> (i32, i32) {
    %c0_i32 = arith.constant 0 : i32
    %c0_i32_0 = arith.constant 0 : i32
    %c0_i32_1 = arith.constant 0 : i32
    return %c0_i32, %c0_i32_0 : i32, i32
  }
  func.func @transform_3(%arg0: i32) -> (i32, i32) {
    %c0_i32 = arith.constant 0 : i32
    %c0_i32_0 = arith.constant 0 : i32
    return %c0_i32, %arg0 : i32, i32
  }
  func.func @transform_4(%arg0: i32) -> (i32, i32) {
    %c0_i32 = arith.constant 0 : i32
    %c0_i32_0 = arith.constant 0 : i32
    return %c0_i32, %arg0 : i32, i32
  }
  func.func @transform_5(%arg0: i32) -> (i32, i32) {
    %c0_i32 = arith.constant 0 : i32
    %c0_i32_0 = arith.constant 0 : i32
    return %c0_i32, %arg0 : i32, i32
  }
}

</mosaic_0001>

<llo_original>
// kernel: tpu_custom_call.1
$region0: #{tpu_custom_call.1}
  #allocation0 [shape = 'u32[]', space=smem, size = 0x4, offset = 0x4, fixed_abs, tag = 'smem constant byte address 0x4 - core index']
  #allocation1 [shape = 'u32[144,128]{1,0:T(1,128)}', space=vmem, size = 0x12000, scoped, tag = 'internal scratch']
  %s0 = inlined_call_operand.hbm [shape: bf16[8,256], index: 0, kind: input, shape index: {}]
  %s1 = inlined_call_operand.hbm [shape: bf16[256,1024], index: 1, kind: input, shape index: {}]
  %s2 = inlined_call_operand.hbm [shape: f32[1,1024], index: 2, kind: input, shape index: {}]
  %s3 = inlined_call_operand.hbm [shape: bf16[1024,256], index: 3, kind: input, shape index: {}]
  %s4 = inlined_call_operand.vmem [shape: f32[1,256], index: 4, kind: input, shape index: {}]
  %s5 = inlined_call_operand.hbm [shape: f32[8,256], index: 5, kind: output, shape index: {}]
  %s6 = sld [smem:[#allocation0]]
  $region69: #{tpu_custom_call.1} parent=0
    _
  %s8 = ssub.s32 1, %s6
  %s9 = scalar_select 0, %s8, %s6
  $region1: #{tpu_custom_call.1} parent=0
    #allocation2 [shape = 'u8[4096]{0}', space=vmem, size = 0x1000, scoped, tag = 'input window, operand 0, single buffered']
    #allocation3 [shape = 's32[2]{0}', space=sflag, size = 0x8, scoped, tag = 'scoped memory for tpu_custom_call.1']
    #allocation4 [shape = 's32[2]{0}', space=sflag, size = 0x8, scoped, tag = 'scoped memory for tpu_custom_call.1']
    #allocation5 [shape = 'u8[524288]{0}', space=vmem, size = 0x80000, scoped, tag = 'input window, operand 1, single buffered']
    #allocation6 [shape = 's32[1]{0}', space=sflag, size = 0x4, scoped, tag = 'scoped memory for tpu_custom_call.1']
    #allocation7 [shape = 'u8[4096]{0}', space=vmem, size = 0x1000, scoped, tag = 'input window, operand 2, single buffered']
    #allocation8 [shape = 'u8[524288]{0}', space=vmem, size = 0x80000, scoped, tag = 'input window, operand 3']
    #allocation9 [shape = 's32[2]{0}', space=sflag, size = 0x8, scoped, tag = 'scoped memory for tpu_custom_call.1']
    #allocation10 [shape = 'u8[8192]{0}', space=vmem, size = 0x2000, scoped, tag = 'output window, operand 0']
    %10 = vsyncpa [#allocation3], 0
    %11 = vsyncpa [#allocation6], 0
    %12 = vsyncpa [#allocation9], 0
    %s13 = scalar_lea.sflag [#allocation9], 1
    %14 = vsyncpa %s13, 0
    %15 = vsyncpa [#allocation4], 0
    %s16 = scalar_lea.sflag [#allocation4], 1
    %17 = vsyncpa %s16, 0
    loop: start=0, step=1, limit=4
    $region2: #{tpu_custom_call.1} parent=1 // loop_pre_header
      _
    $region3: #{tpu_custom_call.1} parent=1 // loop_header
      %s19 = sphi 0, %s23
      %p20 = scmp.ge.s32.totalorder %s19, 4
      %s27 = sphi 0, %s27
      %s29 = sphi 0, %s27
      %s30 = sphi 0, %s29
      %s44 = sphi 0, %s30
      %s48 = sphi 0, %s48
      %s50 = sphi 0, %s48
      %s51 = sphi 0, %s50
      %s65 = sphi 0, %s51
      %s69 = sphi 0, %s69
      %s71 = sphi 0, %s69
      %s72 = sphi 0, %s71
      %s86 = sphi 0, %s72
      %s92 = sphi 0, %s94
      %s95 = sphi 0, %s92
      %s96 = sphi 0, %s95
      %s112 = sphi 0, %s96
      %s118 = sphi 0, %s120
      %s121 = sphi 0, %s118
      %s122 = sphi 0, %s121
      %s138 = sphi 0, %s122
      %s144 = sphi 0, %s146
      %s147 = sphi 0, %s144
      %s148 = sphi 0, %s147
      %s164 = sphi 0, %s148
    $region4: #{tpu_custom_call.1} parent=1 // loop_header_branch
      %22 = sbr.rel (%p20) target = $region8
    $region5: #{tpu_custom_call.1} parent=1 // loop_body
      %s24 = ssub.s32 %s19, 1
      %s25 = ssub.s32 %s19, 2
      %s26 = sadd.s32 %s19, 1
      %s28 = sadd.s32 %s27, 1
      %p31 = scmp.eq.s32.totalorder %s19, 1
      %p32 = scmp.ne.s32.totalorder %s27, %s29
      %p33 = scmp.eq.s32.totalorder %s19, 0
      %p34 = por %p32, %p33
      %p35 = scmp.ne.s32.totalorder %s27, %s29
      %p36 = scmp.eq.s32.totalorder %s24, 1
      %p37 = por %p35, %p36
      %p38 = scmp.ne.s32.totalorder %s29, %s30
      %p39 = scmp.eq.s32.totalorder %s24, 0
      %p40 = por %p38, %p39
      %p41 = scmp.ne.s32.totalorder %s29, %s30
      %p42 = scmp.eq.s32.totalorder %s25, 1
      %p43 = por %p41, %p42
      %p45 = scmp.ne.s32.totalorder %s30, %s44
      %p46 = scmp.eq.s32.totalorder %s25, 0
      %p47 = por %p45, %p46
      %s49 = sadd.s32 %s48, 1
      %p52 = scmp.eq.s32.totalorder %s19, 1
      %p53 = scmp.ne.s32.totalorder %s48, %s50
      %p54 = scmp.eq.s32.totalorder %s19, 0
      %p55 = por %p53, %p54
      %p56 = scmp.ne.s32.totalorder %s48, %s50
      %p57 = scmp.eq.s32.totalorder %s24, 1
      %p58 = por %p56, %p57
      %p59 = scmp.ne.s32.totalorder %s50, %s51
      %p60 = scmp.eq.s32.totalorder %s24, 0
      %p61 = por %p59, %p60
      %p62 = scmp.ne.s32.totalorder %s50, %s51
      %p63 = scmp.eq.s32.totalorder %s25, 1
      %p64 = por %p62, %p63
      %p66 = scmp.ne.s32.totalorder %s51, %s65
      %p67 = scmp.eq.s32.totalorder %s25, 0
      %p68 = por %p66, %p67
      %s70 = sadd.s32 %s69, 1
      %p73 = scmp.eq.s32.totalorder %s19, 1
      %p74 = scmp.ne.s32.totalorder %s69, %s71
      %p75 = scmp.eq.s32.totalorder %s19, 0
      %p76 = por %p74, %p75
      %p77 = scmp.ne.s32.totalorder %s69, %s71
      %p78 = scmp.eq.s32.totalorder %s24, 1
      %p79 = por %p77, %p78
      %p80 = scmp.ne.s32.totalorder %s71, %s72
      %p81 = scmp.eq.s32.totalorder %s24, 0
      %p82 = por %p80, %p81
      %p83 = scmp.ne.s32.totalorder %s71, %s72
      %p84 = scmp.eq.s32.totalorder %s25, 1
      %p85 = por %p83, %p84
      %p87 = scmp.ne.s32.totalorder %s72, %s86
      %p88 = scmp.eq.s32.totalorder %s25, 0
      %p89 = por %p87, %p88
      %s90 = ssub.s32 %s19, %s26
      %p91 = scmp.eq.s32.totalorder %s90, 0
      %s93 = sadd.s32 %s92, 1
      %s94 = scalar_select %p91, %s92, %s93
      %p97 = pneg %p91
      %p98 = scmp.eq.s32.totalorder %s19, 1
      %p99 = por %p97, %p98
      %p100 = scmp.ne.s32.totalorder %s92, %s95
      %p101 = scmp.eq.s32.totalorder %s19, 0
      %p102 = por %p100, %p101
      %p103 = scmp.ne.s32.totalorder %s92, %s95
      %p104 = scmp.eq.s32.totalorder %s24, 1
      %p105 = por %p103, %p104
      %p106 = scmp.ne.s32.totalorder %s95, %s96
      %p107 = scmp.eq.s32.totalorder %s24, 0
      %p108 = por %p106, %p107
      %p109 = scmp.ne.s32.totalorder %s95, %s96
      %p110 = scmp.eq.s32.totalorder %s25, 1
      %p111 = por %p109, %p110
      %p113 = scmp.ne.s32.totalorder %s96, %s112
      %p114 = scmp.eq.s32.totalorder %s25, 0
      %p115 = por %p113, %p114
      %s116 = ssub.s32 %s19, %s26
      %p117 = scmp.eq.s32.totalorder %s116, 0
      %s119 = sadd.s32 %s118, 1
      %s120 = scalar_select %p117, %s118, %s119
      %p123 = pneg %p117
      %p124 = scmp.eq.s32.totalorder %s19, 1
      %p125 = por %p123, %p124
      %p126 = scmp.ne.s32.totalorder %s118, %s121
      %p127 = scmp.eq.s32.totalorder %s19, 0
      %p128 = por %p126, %p127
      %p129 = scmp.ne.s32.totalorder %s118, %s121
      %p130 = scmp.eq.s32.totalorder %s24, 1
      %p131 = por %p129, %p130
      %p132 = scmp.ne.s32.totalorder %s121, %s122
      %p133 = scmp.eq.s32.totalorder %s24, 0
      %p134 = por %p132, %p133
      %p135 = scmp.ne.s32.totalorder %s121, %s122
      %p136 = scmp.eq.s32.totalorder %s25, 1
      %p137 = por %p135, %p136
      %p139 = scmp.ne.s32.totalorder %s122, %s138
      %p140 = scmp.eq.s32.totalorder %s25, 0
      %p141 = por %p139, %p140
      %s142 = ssub.s32 %s19, %s26
      %p143 = scmp.eq.s32.totalorder %s142, 0
      %s145 = sadd.s32 %s144, 1
      %s146 = scalar_select %p143, %s144, %s145
      %p149 = pneg %p143
      %p150 = scmp.eq.s32.totalorder %s19, 1
      %p151 = por %p149, %p150
      %p152 = scmp.ne.s32.totalorder %s144, %s147
      %p153 = scmp.eq.s32.totalorder %s19, 0
      %p154 = por %p152, %p153
      %p155 = scmp.ne.s32.totalorder %s144, %s147
      %p156 = scmp.eq.s32.totalorder %s24, 1
      %p157 = por %p155, %p156
      %p158 = scmp.ne.s32.totalorder %s147, %s148
      %p159 = scmp.eq.s32.totalorder %s24, 0
      %p160 = por %p158, %p159
      %p161 = scmp.ne.s32.totalorder %s147, %s148
      %p162 = scmp.eq.s32.totalorder %s25, 1
      %p163 = por %p161, %p162
      %p165 = scmp.ne.s32.totalorder %s148, %s164
      %p166 = scmp.eq.s32.totalorder %s25, 0
      %p167 = por %p165, %p166
      %p168 = scmp.le.s32.totalorder 1, %s19
      %p169 = scmp.lt.s32.totalorder %s19, 3
      %p170 = pnand %p168, %p169
      %p171 = pneg %p170
      // Predicated region
      $region9: #{tpu_custom_call.1} parent=5 // pred_check
        _
      $region10: #{tpu_custom_call.1} parent=5 // pred_check_branch
        %173 = sbr.rel (%p170) target = $region12
      $region11: #{tpu_custom_call.1} parent=5 // pred_region
        %s174 = ssub.s32 %s19, 1
        // Predicated region
        $region13: #{tpu_custom_call.1} parent=11 // pred_check
          %p175 = pneg %p40
        $region14: #{tpu_custom_call.1} parent=11 // pred_check_branch
          %177 = sbr.rel (%p175) target = $region16
        $region15: #{tpu_custom_call.1} parent=11 // pred_region
          %s179 = ssub.s32 128, 128
          %180 = vsyncadd [#allocation3], %s179
          %s182 = sshll.u32 [#allocation2], 4
          %s183 = int_to_ptr.vmem [resolvable:$true] %s182
          %185 = dma.hbm_to_vmem [thread:$0]  %s0, 128, %s183, [#allocation3]
        $region16: #{tpu_custom_call.1} parent=11 // pred_fallthru
          _
        // Predicated region
        $region17: #{tpu_custom_call.1} parent=11 // pred_check
          %p186 = pneg %p61
        $region18: #{tpu_custom_call.1} parent=11 // pred_check_branch
          %188 = sbr.rel (%p186) target = $region20
        $region19: #{tpu_custom_call.1} parent=11 // pred_region
          %s190 = ssub.s32 16384, 16384
          %191 = vsyncadd [#allocation6], %s190
          %s192 = sshll.u32 [#allocation5], 4
          %s193 = int_to_ptr.vmem [resolvable:$true] %s192
          %198 = dma.hbm_to_vmem [thread:$0]  %s1, 16384, %s193, [#allocation6], 512, 512, 32
        $region20: #{tpu_custom_call.1} parent=11 // pred_fallthru
          _
        // Predicated region
        $region21: #{tpu_custom_call.1} parent=11 // pred_check
          %p199 = pneg %p82
        $region22: #{tpu_custom_call.1} parent=11 // pred_check_branch
          %201 = sbr.rel (%p199) target = $region24
        $region23: #{tpu_custom_call.1} parent=11 // pred_region
          %s203 = ssub.s32 128, 128
          %204 = vsyncadd [#allocation6], %s203
          %s206 = sshll.u32 [#allocation7], 4
          %s207 = int_to_ptr.vmem [resolvable:$true] %s206
          %209 = dma.hbm_to_vmem [thread:$0]  %s2, 128, %s207, [#allocation6]
        $region24: #{tpu_custom_call.1} parent=11 // pred_fallthru
          _
      $region12: #{tpu_custom_call.1} parent=5 // pred_fallthru
        _
      %p210 = scmp.lt.s32.totalorder %s19, 2
      // Predicated region
      $region25: #{tpu_custom_call.1} parent=5 // pred_check
        %p211 = pneg %p210
      $region26: #{tpu_custom_call.1} parent=5 // pred_check_branch
        %213 = sbr.rel (%p211) target = $region28
      $region27: #{tpu_custom_call.1} parent=5 // pred_region
        // Predicated region
        $region29: #{tpu_custom_call.1} parent=27 // pred_check
          %p214 = pneg %p102
        $region30: #{tpu_custom_call.1} parent=27 // pred_check_branch
          %216 = sbr.rel (%p214) target = $region32
        $region31: #{tpu_custom_call.1} parent=27 // pred_region
          %s217 = sand.u32 %s92, 1
          %s218 = scalar_lea.sflag [#allocation9], %s217
          %s219 = sand.u32 %s92, 1
          %s220 = smul.addr %s219, 512
          %s221 = scalar_lea.vmem [#allocation8], %s220
          %s223 = ssub.s32 8192, 8192
          %224 = vsyncadd %s218, %s223
          %s225 = smul.addr %s19, 64
          %s226 = scalar_lea.hbm %s3, %s225
          %s227 = sshll.u32 %s221, 4
          %s228 = int_to_ptr.vmem [resolvable:$true] %s227
          %233 = dma.hbm_to_vmem [thread:$0]  %s226, 8192, %s228, %s218, 128, 64, 4
        $region32: #{tpu_custom_call.1} parent=27 // pred_fallthru
          _
        // Predicated region
        $region33: #{tpu_custom_call.1} parent=27 // pred_check
          %p234 = pneg %p128
        $region34: #{tpu_custom_call.1} parent=27 // pred_check_branch
          %236 = sbr.rel (%p234) target = $region36
        $region35: #{tpu_custom_call.1} parent=27 // pred_region
          %p237 = scmp.lt.s32.totalorder %s19, 1
          %s238 = scalar_select %p237, %s19, 1
          %s239 = scalar_lea.vmem %s4, %s238
        $region36: #{tpu_custom_call.1} parent=27 // pred_fallthru
          _
      $region28: #{tpu_custom_call.1} parent=5 // pred_fallthru
        _
      %p240 = scmp.le.s32.totalorder 1, %s19
      %p241 = scmp.lt.s32.totalorder %s19, 3
      %p242 = pnand %p240, %p241
      %p243 = pneg %p242
      // Predicated region
      $region37: #{tpu_custom_call.1} parent=5 // pred_check
        _
      $region38: #{tpu_custom_call.1} parent=5 // pred_check_branch
        %245 = sbr.rel (%p242) target = $region40
      $region39: #{tpu_custom_call.1} parent=5 // pred_region
        %s246 = ssub.s32 %s19, 1
        // Predicated region
        $region41: #{tpu_custom_call.1} parent=39 // pred_check
          %p247 = pneg %p40
        $region42: #{tpu_custom_call.1} parent=39 // pred_check_branch
          %249 = sbr.rel (%p247) target = $region44
        $region43: #{tpu_custom_call.1} parent=39 // pred_region
          %250 = dma.done [#allocation3], 128
        $region44: #{tpu_custom_call.1} parent=39 // pred_fallthru
          _
        // Predicated region
        $region45: #{tpu_custom_call.1} parent=39 // pred_check
          %p251 = pneg %p61
        $region46: #{tpu_custom_call.1} parent=39 // pred_check_branch
          %253 = sbr.rel (%p251) target = $region48
        $region47: #{tpu_custom_call.1} parent=39 // pred_region
          %254 = dma.done [#allocation6], 16384
        $region48: #{tpu_custom_call.1} parent=39 // pred_fallthru
          _
        // Predicated region
        $region49: #{tpu_custom_call.1} parent=39 // pred_check
          %p255 = pneg %p82
        $region50: #{tpu_custom_call.1} parent=39 // pred_check_branch
          %257 = sbr.rel (%p255) target = $region52
        $region51: #{tpu_custom_call.1} parent=39 // pred_region
          %258 = dma.done [#allocation6], 128
        $region52: #{tpu_custom_call.1} parent=39 // pred_fallthru
          _
        %s259 = sand.u32 %s95, 1
        %s260 = scalar_lea.sflag [#allocation9], %s259
        %s261 = sand.u32 %s95, 1
        %s262 = smul.addr %s261, 512
        %s263 = scalar_lea.vmem [#allocation8], %s262
        // Predicated region
        $region53: #{tpu_custom_call.1} parent=39 // pred_check
          %p264 = pneg %p108
        $region54: #{tpu_custom_call.1} parent=39 // pred_check_branch
          %266 = sbr.rel (%p264) target = $region56
        $region55: #{tpu_custom_call.1} parent=39 // pred_region
          %267 = dma.done %s260, 8192
        $region56: #{tpu_custom_call.1} parent=39 // pred_fallthru
          _
        %p268 = pneg %p40
        %p269 = pneg %p37
        %p270 = pneg %p61
        %p271 = pneg %p58
        %p272 = pneg %p82
        %p273 = pneg %p79
        %s274 = sand.u32 %s95, 1
        %s275 = scalar_lea.sflag [#allocation9], %s274
        %s276 = sand.u32 %s95, 1
        %s277 = smul.addr %s276, 512
        %s278 = scalar_lea.vmem [#allocation8], %s277
        %p279 = pneg %p108
        %p280 = pneg %p105
        %p281 = scmp.lt.s32.totalorder %s24, 1
        %s282 = scalar_select %p281, %s24, 1
        %s283 = scalar_lea.vmem %s4, %s282
        %p284 = pneg %p134
        %p285 = pneg %p131
        %p286 = pneg %p160
        %p287 = pneg %p157
        %s288 = sand.u32 %s147, 1
        %s289 = scalar_lea.sflag [#allocation4], %s288
        %s290 = sand.u32 %s147, 1
        %s291 = smul.addr %s290, 8
        %s292 = scalar_lea.vmem [#allocation10], %s291
        %p293 = scmp.lt.s32.totalorder %s24, 1
        %s294 = scalar_select %p293, %s24, 1
        %s295 = scalar_lea.vmem %s4, %s294
        %v296 = vld [vmem:[#allocation2] sm:$0xff]
        %v297 = vld [vmem:[#allocation5] sm:$0xff]
        %v298 = vld [vmem:[#allocation5 + $0x8] sm:$0xff]
        %v299 = vld [vmem:[#allocation5 + $0x10] sm:$0xff]
        %v300 = vld [vmem:[#allocation5 + $0x18] sm:$0xff]
        %v301 = vld [vmem:[#allocation5 + $0x20] sm:$0xff]
        %v302 = vld [vmem:[#allocation5 + $0x28] sm:$0xff]
        %v303 = vld [vmem:[#allocation5 + $0x30] sm:$0xff]
        %v304 = vld [vmem:[#allocation5 + $0x38] sm:$0xff]
        %v305 = vld [vmem:[#allocation5 + $0x40] sm:$0xff]
        %v306 = vld [vmem:[#allocation5 + $0x48] sm:$0xff]
        %v307 = vld [vmem:[#allocation5 + $0x50] sm:$0xff]
        %v308 = vld [vmem:[#allocation5 + $0x58] sm:$0xff]
        %v309 = vld [vmem:[#allocation5 + $0x60] sm:$0xff]
        %v310 = vld [vmem:[#allocation5 + $0x68] sm:$0xff]
        %v311 = vld [vmem:[#allocation5 + $0x70] sm:$0xff]
        %v312 = vld [vmem:[#allocation5 + $0x78] sm:$0xff]
        %v313 = vld [vmem:[#allocation5 + $0x80] sm:$0xff]
        %v314 = vld [vmem:[#allocation5 + $0x88] sm:$0xff]
        %v315 = vld [vmem:[#allocation5 + $0x90] sm:$0xff]
        %v316 = vld [vmem:[#allocation5 + $0x98] sm:$0xff]
        %v317 = vld [vmem:[#allocation5 + $0xa0] sm:$0xff]
        %v318 = vld [vmem:[#allocation5 + $0xa8] sm:$0xff]
        %v319 = vld [vmem:[#allocation5 + $0xb0] sm:$0xff]
        %v320 = vld [vmem:[#allocation5 + $0xb8] sm:$0xff]
        %v321 = vld [vmem:[#allocation5 + $0xc0] sm:$0xff]
        %v322 = vld [vmem:[#allocation5 + $0xc8] sm:$0xff]
        %v323 = vld [vmem:[#allocation5 + $0xd0] sm:$0xff]
        %v324 = vld [vmem:[#allocation5 + $0xd8] sm:$0xff]
        %v325 = vld [vmem:[#allocation5 + $0xe0] sm:$0xff]
        %v326 = vld [vmem:[#allocation5 + $0xe8] sm:$0xff]
        %v327 = vld [vmem:[#allocation5 + $0xf0] sm:$0xff]
        %v328 = vld [vmem:[#allocation5 + $0xf8] sm:$0xff]
        %v329 = vld [vmem:[#allocation5 + $0x100] sm:$0xff]
        %v330 = vld [vmem:[#allocation5 + $0x108] sm:$0xff]
        %v331 = vld [vmem:[#allocation5 + $0x110] sm:$0xff]
        %v332 = vld [vmem:[#allocation5 + $0x118] sm:$0xff]
        %v333 = vld [vmem:[#allocation5 + $0x120] sm:$0xff]
        %v334 = vld [vmem:[#allocation5 + $0x128] sm:$0xff]
        %v335 = vld [vmem:[#allocation5 + $0x130] sm:$0xff]
        %v336 = vld [vmem:[#allocation5 + $0x138] sm:$0xff]
        %v337 = vld [vmem:[#allocation5 + $0x140] sm:$0xff]
        %v338 = vld [vmem:[#allocation5 + $0x148] sm:$0xff]
        %v339 = vld [vmem:[#allocation5 + $0x150] sm:$0xff]
        %v340 = vld [vmem:[#allocation5 + $0x158] sm:$0xff]
        %v341 = vld [vmem:[#allocation5 + $0x160] sm:$0xff]
        %v342 = vld [vmem:[#allocation5 + $0x168] sm:$0xff]
        %v343 = vld [vmem:[#allocation5 + $0x170] sm:$0xff]
        %v344 = vld [vmem:[#allocation5 + $0x178] sm:$0xff]
        %v345 = vld [vmem:[#allocation5 + $0x180] sm:$0xff]
        %v346 = vld [vmem:[#allocation5 + $0x188] sm:$0xff]
        %v347 = vld [vmem:[#allocation5 + $0x190] sm:$0xff]
        %v348 = vld [vmem:[#allocation5 + $0x198] sm:$0xff]
        %v349 = vld [vmem:[#allocation5 + $0x1a0] sm:$0xff]
        %v350 = vld [vmem:[#allocation5 + $0x1a8] sm:$0xff]
        %v351 = vld [vmem:[#allocation5 + $0x1b0] sm:$0xff]
        %v352 = vld [vmem:[#allocation5 + $0x1b8] sm:$0xff]
        %v353 = vld [vmem:[#allocation5 + $0x1c0] sm:$0xff]
        %v354 = vld [vmem:[#allocation5 + $0x1c8] sm:$0xff]
        %v355 = vld [vmem:[#allocation5 + $0x1d0] sm:$0xff]
        %v356 = vld [vmem:[#allocation5 + $0x1d8] sm:$0xff]
        %v357 = vld [vmem:[#allocation5 + $0x1e0] sm:$0xff]
        %v358 = vld [vmem:[#allocation5 + $0x1e8] sm:$0xff]
        %v359 = vld [vmem:[#allocation5 + $0x1f0] sm:$0xff]
        %v360 = vld [vmem:[#allocation5 + $0x1f8] sm:$0xff]
        %v361 = vld [vmem:[#allocation5 + $0x200] sm:$0xff]
        %v362 = vld [vmem:[#allocation5 + $0x208] sm:$0xff]
        %v363 = vld [vmem:[#allocation5 + $0x210] sm:$0xff]
        %v364 = vld [vmem:[#allocation5 + $0x218] sm:$0xff]
        %v365 = vld [vmem:[#allocation5 + $0x220] sm:$0xff]
        %v366 = vld [vmem:[#allocation5 + $0x228] sm:$0xff]
        %v367 = vld [vmem:[#allocation5 + $0x230] sm:$0xff]
        %v368 = vld [vmem:[#allocation5 + $0x238] sm:$0xff]
        %v369 = vld [vmem:[#allocation5 + $0x240] sm:$0xff]
        %v370 = vld [vmem:[#allocation5 + $0x248] sm:$0xff]
        %v371 = vld [vmem:[#allocation5 + $0x250] sm:$0xff]
        %v372 = vld [vmem:[#allocation5 + $0x258] sm:$0xff]
        %v373 = vld [vmem:[#allocation5 + $0x260] sm:$0xff]
        %v374 = vld [vmem:[#allocation5 + $0x268] sm:$0xff]
        %v375 = vld [vmem:[#allocation5 + $0x270] sm:$0xff]
        %v376 = vld [vmem:[#allocation5 + $0x278] sm:$0xff]
        %v377 = vld [vmem:[#allocation5 + $0x280] sm:$0xff]
        %v378 = vld [vmem:[#allocation5 + $0x288] sm:$0xff]
        %v379 = vld [vmem:[#allocation5 + $0x290] sm:$0xff]
        %v380 = vld [vmem:[#allocation5 + $0x298] sm:$0xff]
        %v381 = vld [vmem:[#allocation5 + $0x2a0] sm:$0xff]
        %v382 = vld [vmem:[#allocation5 + $0x2a8] sm:$0xff]
        %v383 = vld [vmem:[#allocation5 + $0x2b0] sm:$0xff]
        %v384 = vld [vmem:[#allocation5 + $0x2b8] sm:$0xff]
        %v385 = vld [vmem:[#allocation5 + $0x2c0] sm:$0xff]
        %v386 = vld [vmem:[#allocation5 + $0x2c8] sm:$0xff]
        %v387 = vld [vmem:[#allocation5 + $0x2d0] sm:$0xff]
        %v388 = vld [vmem:[#allocation5 + $0x2d8] sm:$0xff]
        %v389 = vld [vmem:[#allocation5 + $0x2e0] sm:$0xff]
        %v390 = vld [vmem:[#allocation5 + $0x2e8] sm:$0xff]
        %v391 = vld [vmem:[#allocation5 + $0x2f0] sm:$0xff]
        %v392 = vld [vmem:[#allocation5 + $0x2f8] sm:$0xff]
        %v393 = vld [vmem:[#allocation5 + $0x300] sm:$0xff]
        %v394 = vld [vmem:[#allocation5 + $0x308] sm:$0xff]
        %v395 = vld [vmem:[#allocation5 + $0x310] sm:$0xff]
        %v396 = vld [vmem:[#allocation5 + $0x318] sm:$0xff]
        %v397 = vld [vmem:[#allocation5 + $0x320] sm:$0xff]
        %v398 = vld [vmem:[#allocation5 + $0x328] sm:$0xff]
        %v399 = vld [vmem:[#allocation5 + $0x330] sm:$0xff]
        %v400 = vld [vmem:[#allocation5 + $0x338] sm:$0xff]
        %v401 = vld [vmem:[#allocation5 + $0x340] sm:$0xff]
        %v402 = vld [vmem:[#allocation5 + $0x348] sm:$0xff]
        %v403 = vld [vmem:[#allocation5 + $0x350] sm:$0xff]
        %v404 = vld [vmem:[#allocation5 + $0x358] sm:$0xff]
        %v405 = vld [vmem:[#allocation5 + $0x360] sm:$0xff]
        %v406 = vld [vmem:[#allocation5 + $0x368] sm:$0xff]
        %v407 = vld [vmem:[#allocation5 + $0x370] sm:$0xff]
        %v408 = vld [vmem:[#allocation5 + $0x378] sm:$0xff]
        %v409 = vld [vmem:[#allocation5 + $0x380] sm:$0xff]
        %v410 = vld [vmem:[#allocation5 + $0x388] sm:$0xff]
        %v411 = vld [vmem:[#allocation5 + $0x390] sm:$0xff]
        %v412 = vld [vmem:[#allocation5 + $0x398] sm:$0xff]
        %v413 = vld [vmem:[#allocation5 + $0x3a0] sm:$0xff]
        %v414 = vld [vmem:[#allocation5 + $0x3a8] sm:$0xff]
        %v415 = vld [vmem:[#allocation5 + $0x3b0] sm:$0xff]
        %v416 = vld [vmem:[#allocation5 + $0x3b8] sm:$0xff]
        %v417 = vld [vmem:[#allocation5 + $0x3c0] sm:$0xff]
        %v418 = vld [vmem:[#allocation5 + $0x3c8] sm:$0xff]
        %v419 = vld [vmem:[#allocation5 + $0x3d0] sm:$0xff]
        %v420 = vld [vmem:[#allocation5 + $0x3d8] sm:$0xff]
        %v421 = vld [vmem:[#allocation5 + $0x3e0] sm:$0xff]
        %v422 = vld [vmem:[#allocation5 + $0x3e8] sm:$0xff]
        %v423 = vld [vmem:[#allocation5 + $0x3f0] sm:$0xff]
        %v424 = vld [vmem:[#allocation5 + $0x3f8] sm:$0xff]
        %v425 = vld [vmem:[#allocation7] sm:$0xff]
        %v427 = vlaneseq
        %v428 = vshrl.u32 %v427, 7
        %v429 = vsub.s32 0, %v428
        %v430 = vrot.slane %v425, %v429
        %v431 = vlaneseq
        %v432 = vshrl.u32 %v431, 7
        %v433 = vsub.s32 1, %v432
        %v434 = vrot.slane %v425, %v433
        %v435 = vlaneseq
        %v436 = vshrl.u32 %v435, 7
        %v437 = vsub.s32 2, %v436
        %v438 = vrot.slane %v425, %v437
        %v439 = vlaneseq
        %v440 = vshrl.u32 %v439, 7
        %v441 = vsub.s32 3, %v440
        %v442 = vrot.slane %v425, %v441
        %v443 = vlaneseq
        %v444 = vshrl.u32 %v443, 7
        %v445 = vsub.s32 4, %v444
        %v446 = vrot.slane %v425, %v445
        %v447 = vlaneseq
        %v448 = vshrl.u32 %v447, 7
        %v449 = vsub.s32 5, %v448
        %v450 = vrot.slane %v425, %v449
        %v451 = vlaneseq
        %v452 = vshrl.u32 %v451, 7
        %v453 = vsub.s32 6, %v452
        %v454 = vrot.slane %v425, %v453
        %v455 = vlaneseq
        %v456 = vshrl.u32 %v455, 7
        %v457 = vsub.s32 7, %v456
        %v458 = vrot.slane %v425, %v457
        %v468 = vunpack.c.l.b16 %v296
        %v469 = vunpack.c.h.b16 %v296
        %v470 = vpack.c.b16 %v468, %v468
        %v471 = vpack.c.b16 %v469, %v469
        %v602 = vunpack.c.l.b16 %v297
        %v603 = vunpack.c.h.b16 %v297
        %v604 = vunpack.c.l.b16 %v298
        %v605 = vunpack.c.h.b16 %v298
        %v606 = vunpack.c.l.b16 %v299
        %v607 = vunpack.c.h.b16 %v299
        %v608 = vunpack.c.l.b16 %v300
        %v609 = vunpack.c.h.b16 %v300
        %v610 = vunpack.c.l.b16 %v301
        %v611 = vunpack.c.h.b16 %v301
        %v612 = vunpack.c.l.b16 %v302
        %v613 = vunpack.c.h.b16 %v302
        %v614 = vunpack.c.l.b16 %v303
        %v615 = vunpack.c.h.b16 %v303
        %v616 = vunpack.c.l.b16 %v304
        %v617 = vunpack.c.h.b16 %v304
        %v618 = vunpack.c.l.b16 %v305
        %v619 = vunpack.c.h.b16 %v305
        %v620 = vunpack.c.l.b16 %v306
        %v621 = vunpack.c.h.b16 %v306
        %v622 = vunpack.c.l.b16 %v307
        %v623 = vunpack.c.h.b16 %v307
        %v624 = vunpack.c.l.b16 %v308
        %v625 = vunpack.c.h.b16 %v308
        %v626 = vunpack.c.l.b16 %v309
        %v627 = vunpack.c.h.b16 %v309
        %v628 = vunpack.c.l.b16 %v310
        %v629 = vunpack.c.h.b16 %v310
        %v630 = vunpack.c.l.b16 %v311
        %v631 = vunpack.c.h.b16 %v311
        %v632 = vunpack.c.l.b16 %v312
        %v633 = vunpack.c.h.b16 %v312
        %v634 = vunpack.c.l.b16 %v313
        %v635 = vunpack.c.h.b16 %v313
        %v636 = vunpack.c.l.b16 %v314
        %v637 = vunpack.c.h.b16 %v314
        %v638 = vunpack.c.l.b16 %v315
        %v639 = vunpack.c.h.b16 %v315
        %v640 = vunpack.c.l.b16 %v316
        %v641 = vunpack.c.h.b16 %v316
        %v642 = vunpack.c.l.b16 %v317
        %v643 = vunpack.c.h.b16 %v317
        %v644 = vunpack.c.l.b16 %v318
        %v645 = vunpack.c.h.b16 %v318
        %v646 = vunpack.c.l.b16 %v319
        %v647 = vunpack.c.h.b16 %v319
        %v648 = vunpack.c.l.b16 %v320
        %v649 = vunpack.c.h.b16 %v320
        %v650 = vunpack.c.l.b16 %v321
        %v651 = vunpack.c.h.b16 %v321
        %v652 = vunpack.c.l.b16 %v322
        %v653 = vunpack.c.h.b16 %v322
        %v654 = vunpack.c.l.b16 %v323
        %v655 = vunpack.c.h.b16 %v323
        %v656 = vunpack.c.l.b16 %v324
        %v657 = vunpack.c.h.b16 %v324
        %v658 = vunpack.c.l.b16 %v325
        %v659 = vunpack.c.h.b16 %v325
        %v660 = vunpack.c.l.b16 %v326
        %v661 = vunpack.c.h.b16 %v326
        %v662 = vunpack.c.l.b16 %v327
        %v663 = vunpack.c.h.b16 %v327
        %v664 = vunpack.c.l.b16 %v328
        %v665 = vunpack.c.h.b16 %v328
        %v666 = vunpack.c.l.b16 %v329
        %v667 = vunpack.c.h.b16 %v329
        %v668 = vunpack.c.l.b16 %v330
        %v669 = vunpack.c.h.b16 %v330
        %v670 = vunpack.c.l.b16 %v331
        %v671 = vunpack.c.h.b16 %v331
        %v672 = vunpack.c.l.b16 %v332
        %v673 = vunpack.c.h.b16 %v332
        %v674 = vunpack.c.l.b16 %v333
        %v675 = vunpack.c.h.b16 %v333
        %v676 = vunpack.c.l.b16 %v334
        %v677 = vunpack.c.h.b16 %v334
        %v678 = vunpack.c.l.b16 %v335
        %v679 = vunpack.c.h.b16 %v335
        %v680 = vunpack.c.l.b16 %v336
        %v681 = vunpack.c.h.b16 %v336
        %v682 = vunpack.c.l.b16 %v337
        %v683 = vunpack.c.h.b16 %v337
        %v684 = vunpack.c.l.b16 %v338
        %v685 = vunpack.c.h.b16 %v338
        %v686 = vunpack.c.l.b16 %v339
        %v687 = vunpack.c.h.b16 %v339
        %v688 = vunpack.c.l.b16 %v340
        %v689 = vunpack.c.h.b16 %v340
        %v690 = vunpack.c.l.b16 %v341
        %v691 = vunpack.c.h.b16 %v341
        %v692 = vunpack.c.l.b16 %v342
        %v693 = vunpack.c.h.b16 %v342
        %v694 = vunpack.c.l.b16 %v343
        %v695 = vunpack.c.h.b16 %v343
        %v696 = vunpack.c.l.b16 %v344
        %v697 = vunpack.c.h.b16 %v344
        %v698 = vunpack.c.l.b16 %v345
        %v699 = vunpack.c.h.b16 %v345
        %v700 = vunpack.c.l.b16 %v346
        %v701 = vunpack.c.h.b16 %v346
        %v702 = vunpack.c.l.b16 %v347
        %v703 = vunpack.c.h.b16 %v347
        %v704 = vunpack.c.l.b16 %v348
        %v705 = vunpack.c.h.b16 %v348
        %v706 = vunpack.c.l.b16 %v349
        %v707 = vunpack.c.h.b16 %v349
        %v708 = vunpack.c.l.b16 %v350
        %v709 = vunpack.c.h.b16 %v350
        %v710 = vunpack.c.l.b16 %v351
        %v711 = vunpack.c.h.b16 %v351
        %v712 = vunpack.c.l.b16 %v352
        %v713 = vunpack.c.h.b16 %v352
        %v714 = vunpack.c.l.b16 %v353
        %v715 = vunpack.c.h.b16 %v353
        %v716 = vunpack.c.l.b16 %v354
        %v717 = vunpack.c.h.b16 %v354
        %v718 = vunpack.c.l.b16 %v355
        %v719 = vunpack.c.h.b16 %v355
        %v720 = vunpack.c.l.b16 %v356
        %v721 = vunpack.c.h.b16 %v356
        %v722 = vunpack.c.l.b16 %v357
        %v723 = vunpack.c.h.b16 %v357
        %v724 = vunpack.c.l.b16 %v358
        %v725 = vunpack.c.h.b16 %v358
        %v726 = vunpack.c.l.b16 %v359
        %v727 = vunpack.c.h.b16 %v359
        %v728 = vunpack.c.l.b16 %v360
        %v729 = vunpack.c.h.b16 %v360
        %v730 = vunpack.c.l.b16 %v361
        %v731 = vunpack.c.h.b16 %v361
        %v732 = vunpack.c.l.b16 %v362
        %v733 = vunpack.c.h.b16 %v362
        %v734 = vunpack.c.l.b16 %v363
        %v735 = vunpack.c.h.b16 %v363
        %v736 = vunpack.c.l.b16 %v364
        %v737 = vunpack.c.h.b16 %v364
        %v738 = vunpack.c.l.b16 %v365
        %v739 = vunpack.c.h.b16 %v365
        %v740 = vunpack.c.l.b16 %v366
        %v741 = vunpack.c.h.b16 %v366
        %v742 = vunpack.c.l.b16 %v367
        %v743 = vunpack.c.h.b16 %v367
        %v744 = vunpack.c.l.b16 %v368
        %v745 = vunpack.c.h.b16 %v368
        %v746 = vunpack.c.l.b16 %v369
        %v747 = vunpack.c.h.b16 %v369
        %v748 = vunpack.c.l.b16 %v370
        %v749 = vunpack.c.h.b16 %v370
        %v750 = vunpack.c.l.b16 %v371
        %v751 = vunpack.c.h.b16 %v371
        %v752 = vunpack.c.l.b16 %v372
        %v753 = vunpack.c.h.b16 %v372
        %v754 = vunpack.c.l.b16 %v373
        %v755 = vunpack.c.h.b16 %v373
        %v756 = vunpack.c.l.b16 %v374
        %v757 = vunpack.c.h.b16 %v374
        %v758 = vunpack.c.l.b16 %v375
        %v759 = vunpack.c.h.b16 %v375
        %v760 = vunpack.c.l.b16 %v376
        %v761 = vunpack.c.h.b16 %v376
        %v762 = vunpack.c.l.b16 %v377
        %v763 = vunpack.c.h.b16 %v377
        %v764 = vunpack.c.l.b16 %v378
        %v765 = vunpack.c.h.b16 %v378
        %v766 = vunpack.c.l.b16 %v379
        %v767 = vunpack.c.h.b16 %v379
        %v768 = vunpack.c.l.b16 %v380
        %v769 = vunpack.c.h.b16 %v380
        %v770 = vunpack.c.l.b16 %v381
        %v771 = vunpack.c.h.b16 %v381
        %v772 = vunpack.c.l.b16 %v382
        %v773 = vunpack.c.h.b16 %v382
        %v774 = vunpack.c.l.b16 %v383
        %v775 = vunpack.c.h.b16 %v383
        %v776 = vunpack.c.l.b16 %v384
        %v777 = vunpack.c.h.b16 %v384
        %v778 = vunpack.c.l.b16 %v385
        %v779 = vunpack.c.h.b16 %v385
        %v780 = vunpack.c.l.b16 %v386
        %v781 = vunpack.c.h.b16 %v386
        %v782 = vunpack.c.l.b16 %v387
        %v783 = vunpack.c.h.b16 %v387
        %v784 = vunpack.c.l.b16 %v388
        %v785 = vunpack.c.h.b16 %v388
        %v786 = vunpack.c.l.b16 %v389
        %v787 = vunpack.c.h.b16 %v389
        %v788 = vunpack.c.l.b16 %v390
        %v789 = vunpack.c.h.b16 %v390
        %v790 = vunpack.c.l.b16 %v391
        %v791 = vunpack.c.h.b16 %v391
        %v792 = vunpack.c.l.b16 %v392
        %v793 = vunpack.c.h.b16 %v392
        %v794 = vunpack.c.l.b16 %v393
        %v795 = vunpack.c.h.b16 %v393
        %v796 = vunpack.c.l.b16 %v394
        %v797 = vunpack.c.h.b16 %v394
        %v798 = vunpack.c.l.b16 %v395
        %v799 = vunpack.c.h.b16 %v395
        %v800 = vunpack.c.l.b16 %v396
        %v801 = vunpack.c.h.b16 %v396
        %v802 = vunpack.c.l.b16 %v397
        %v803 = vunpack.c.h.b16 %v397
        %v804 = vunpack.c.l.b16 %v398
        %v805 = vunpack.c.h.b16 %v398
        %v806 = vunpack.c.l.b16 %v399
        %v807 = vunpack.c.h.b16 %v399
        %v808 = vunpack.c.l.b16 %v400
        %v809 = vunpack.c.h.b16 %v400
        %v810 = vunpack.c.l.b16 %v401
        %v811 = vunpack.c.h.b16 %v401
        %v812 = vunpack.c.l.b16 %v402
        %v813 = vunpack.c.h.b16 %v402
        %v814 = vunpack.c.l.b16 %v403
        %v815 = vunpack.c.h.b16 %v403
        %v816 = vunpack.c.l.b16 %v404
        %v817 = vunpack.c.h.b16 %v404
        %v818 = vunpack.c.l.b16 %v405
        %v819 = vunpack.c.h.b16 %v405
        %v820 = vunpack.c.l.b16 %v406
        %v821 = vunpack.c.h.b16 %v406
        %v822 = vunpack.c.l.b16 %v407
        %v823 = vunpack.c.h.b16 %v407
        %v824 = vunpack.c.l.b16 %v408
        %v825 = vunpack.c.h.b16 %v408
        %v826 = vunpack.c.l.b16 %v409
        %v827 = vunpack.c.h.b16 %v409
        %v828 = vunpack.c.l.b16 %v410
        %v829 = vunpack.c.h.b16 %v410
        %v830 = vunpack.c.l.b16 %v411
        %v831 = vunpack.c.h.b16 %v411
        %v832 = vunpack.c.l.b16 %v412
        %v833 = vunpack.c.h.b16 %v412
        %v834 = vunpack.c.l.b16 %v413
        %v835 = vunpack.c.h.b16 %v413
        %v836 = vunpack.c.l.b16 %v414
        %v837 = vunpack.c.h.b16 %v414
        %v838 = vunpack.c.l.b16 %v415
        %v839 = vunpack.c.h.b16 %v415
        %v840 = vunpack.c.l.b16 %v416
        %v841 = vunpack.c.h.b16 %v416
        %v842 = vunpack.c.l.b16 %v417
        %v843 = vunpack.c.h.b16 %v417
        %v844 = vunpack.c.l.b16 %v418
        %v845 = vunpack.c.h.b16 %v418
        %v846 = vunpack.c.l.b16 %v419
        %v847 = vunpack.c.h.b16 %v419
        %v848 = vunpack.c.l.b16 %v420
        %v849 = vunpack.c.h.b16 %v420
        %v850 = vunpack.c.l.b16 %v421
        %v851 = vunpack.c.h.b16 %v421
        %v852 = vunpack.c.l.b16 %v422
        %v853 = vunpack.c.h.b16 %v422
        %v854 = vunpack.c.l.b16 %v423
        %v855 = vunpack.c.h.b16 %v423
        %v856 = vunpack.c.l.b16 %v424
        %v857 = vunpack.c.h.b16 %v424
        %v858 = vpack.c.b16 %v610, %v602
        %v859 = vpack.c.b16 %v611, %v603
        %v860 = vpack.c.b16 %v612, %v604
        %v861 = vpack.c.b16 %v613, %v605
        %v862 = vpack.c.b16 %v614, %v606
        %v863 = vpack.c.b16 %v615, %v607
        %v864 = vpack.c.b16 %v616, %v608
        %v865 = vpack.c.b16 %v617, %v609
        %v866 = vpack.c.b16 %v626, %v618
        %v867 = vpack.c.b16 %v627, %v619
        %v868 = vpack.c.b16 %v628, %v620
        %v869 = vpack.c.b16 %v629, %v621
        %v870 = vpack.c.b16 %v630, %v622
        %v871 = vpack.c.b16 %v631, %v623
        %v872 = vpack.c.b16 %v632, %v624
        %v873 = vpack.c.b16 %v633, %v625
        %v874 = vpack.c.b16 %v642, %v634
        %v875 = vpack.c.b16 %v643, %v635
        %v876 = vpack.c.b16 %v644, %v636
        %v877 = vpack.c.b16 %v645, %v637
        %v878 = vpack.c.b16 %v646, %v638
        %v879 = vpack.c.b16 %v647, %v639
        %v880 = vpack.c.b16 %v648, %v640
        %v881 = vpack.c.b16 %v649, %v641
        %v882 = vpack.c.b16 %v658, %v650
        %v883 = vpack.c.b16 %v659, %v651
        %v884 = vpack.c.b16 %v660, %v652
        %v885 = vpack.c.b16 %v661, %v653
        %v886 = vpack.c.b16 %v662, %v654
        %v887 = vpack.c.b16 %v663, %v655
        %v888 = vpack.c.b16 %v664, %v656
        %v889 = vpack.c.b16 %v665, %v657
        %v890 = vpack.c.b16 %v674, %v666
        %v891 = vpack.c.b16 %v675, %v667
        %v892 = vpack.c.b16 %v676, %v668
        %v893 = vpack.c.b16 %v677, %v669
        %v894 = vpack.c.b16 %v678, %v670
        %v895 = vpack.c.b16 %v679, %v671
        %v896 = vpack.c.b16 %v680, %v672
        %v897 = vpack.c.b16 %v681, %v673
        %v898 = vpack.c.b16 %v690, %v682
        %v899 = vpack.c.b16 %v691, %v683
        %v900 = vpack.c.b16 %v692, %v684
        %v901 = vpack.c.b16 %v693, %v685
        %v902 = vpack.c.b16 %v694, %v686
        %v903 = vpack.c.b16 %v695, %v687
        %v904 = vpack.c.b16 %v696, %v688
        %v905 = vpack.c.b16 %v697, %v689
        %v906 = vpack.c.b16 %v706, %v698
        %v907 = vpack.c.b16 %v707, %v699
        %v908 = vpack.c.b16 %v708, %v700
        %v909 = vpack.c.b16 %v709, %v701
        %v910 = vpack.c.b16 %v710, %v702
        %v911 = vpack.c.b16 %v711, %v703
        %v912 = vpack.c.b16 %v712, %v704
        %v913 = vpack.c.b16 %v713, %v705
        %v914 = vpack.c.b16 %v722, %v714
        %v915 = vpack.c.b16 %v723, %v715
        %v916 = vpack.c.b16 %v724, %v716
        %v917 = vpack.c.b16 %v725, %v717
        %v918 = vpack.c.b16 %v726, %v718
        %v919 = vpack.c.b16 %v727, %v719
        %v920 = vpack.c.b16 %v728, %v720
        %v921 = vpack.c.b16 %v729, %v721
        %v922 = vpack.c.b16 %v738, %v730
        %v923 = vpack.c.b16 %v739, %v731
        %v924 = vpack.c.b16 %v740, %v732
        %v925 = vpack.c.b16 %v741, %v733
        %v926 = vpack.c.b16 %v742, %v734
        %v927 = vpack.c.b16 %v743, %v735
        %v928 = vpack.c.b16 %v744, %v736
        %v929 = vpack.c.b16 %v745, %v737
        %v930 = vpack.c.b16 %v754, %v746
        %v931 = vpack.c.b16 %v755, %v747
        %v932 = vpack.c.b16 %v756, %v748
        %v933 = vpack.c.b16 %v757, %v749
        %v934 = vpack.c.b16 %v758, %v750
        %v935 = vpack.c.b16 %v759, %v751
        %v936 = vpack.c.b16 %v760, %v752
        %v937 = vpack.c.b16 %v761, %v753
        %v938 = vpack.c.b16 %v770, %v762
        %v939 = vpack.c.b16 %v771, %v763
        %v940 = vpack.c.b16 %v772, %v764
        %v941 = vpack.c.b16 %v773, %v765
        %v942 = vpack.c.b16 %v774, %v766
        %v943 = vpack.c.b16 %v775, %v767
        %v944 = vpack.c.b16 %v776, %v768
        %v945 = vpack.c.b16 %v777, %v769
        %v946 = vpack.c.b16 %v786, %v778
        %v947 = vpack.c.b16 %v787, %v779
        %v948 = vpack.c.b16 %v788, %v780
        %v949 = vpack.c.b16 %v789, %v781
        %v950 = vpack.c.b16 %v790, %v782
        %v951 = vpack.c.b16 %v791, %v783
        %v952 = vpack.c.b16 %v792, %v784
        %v953 = vpack.c.b16 %v793, %v785
        %v954 = vpack.c.b16 %v802, %v794
        %v955 = vpack.c.b16 %v803, %v795
        %v956 = vpack.c.b16 %v804, %v796
        %v957 = vpack.c.b16 %v805, %v797
        %v958 = vpack.c.b16 %v806, %v798
        %v959 = vpack.c.b16 %v807, %v799
        %v960 = vpack.c.b16 %v808, %v800
        %v961 = vpack.c.b16 %v809, %v801
        %v962 = vpack.c.b16 %v818, %v810
        %v963 = vpack.c.b16 %v819, %v811
        %v964 = vpack.c.b16 %v820, %v812
        %v965 = vpack.c.b16 %v821, %v813
        %v966 = vpack.c.b16 %v822, %v814
        %v967 = vpack.c.b16 %v823, %v815
        %v968 = vpack.c.b16 %v824, %v816
        %v969 = vpack.c.b16 %v825, %v817
        %v970 = vpack.c.b16 %v834, %v826
        %v971 = vpack.c.b16 %v835, %v827
        %v972 = vpack.c.b16 %v836, %v828
        %v973 = vpack.c.b16 %v837, %v829
        %v974 = vpack.c.b16 %v838, %v830
        %v975 = vpack.c.b16 %v839, %v831
        %v976 = vpack.c.b16 %v840, %v832
        %v977 = vpack.c.b16 %v841, %v833
        %v978 = vpack.c.b16 %v850, %v842
        %v979 = vpack.c.b16 %v851, %v843
        %v980 = vpack.c.b16 %v852, %v844
        %v981 = vpack.c.b16 %v853, %v845
        %v982 = vpack.c.b16 %v854, %v846
        %v983 = vpack.c.b16 %v855, %v847
        %v984 = vpack.c.b16 %v856, %v848
        %v985 = vpack.c.b16 %v857, %v849
        %1114 = vmatprep.subr.bf16.mxu0 %v859
        %1115 = vmatpush1.bf16.msra.mxu0 %v858
        %1116 = vmatprep.subr.bf16.mxu0 %v867
        %1117 = vmatpush1.bf16.msra.mxu0 %v866
        %1118 = vmatprep.subr.bf16.mxu0 %v875
        %1119 = vmatpush1.bf16.msra.mxu0 %v874
        %1120 = vmatprep.subr.bf16.mxu0 %v883
        %1121 = vmatpush1.bf16.msra.mxu0 %v882
        %1122 = vmatprep.subr.bf16.mxu0 %v891
        %1123 = vmatpush1.bf16.msra.mxu0 %v890
        %1124 = vmatprep.subr.bf16.mxu0 %v899
        %1125 = vmatpush1.bf16.msra.mxu0 %v898
        %1126 = vmatprep.subr.bf16.mxu0 %v907
        %1127 = vmatpush1.bf16.msra.mxu0 %v906
        %1128 = vmatprep.subr.bf16.mxu0 %v915
        %1129 = vmatpush1.bf16.msra.mxu0 %v914
        %1130 = vmatprep.subr.bf16.mxu0 %v923
        %1131 = vmatpush1.bf16.msra.mxu0 %v922
        %1132 = vmatprep.subr.bf16.mxu0 %v931
        %1133 = vmatpush1.bf16.msra.mxu0 %v930
        %1134 = vmatprep.subr.bf16.mxu0 %v939
        %1135 = vmatpush1.bf16.msra.mxu0 %v938
        %1136 = vmatprep.subr.bf16.mxu0 %v947
        %1137 = vmatpush1.bf16.msra.mxu0 %v946
        %1138 = vmatprep.subr.bf16.mxu0 %v955
        %1139 = vmatpush1.bf16.msra.mxu0 %v954
        %1140 = vmatprep.subr.bf16.mxu0 %v963
        %1141 = vmatpush1.bf16.msra.mxu0 %v962
        %1142 = vmatprep.subr.bf16.mxu0 %v971
        %1143 = vmatpush1.bf16.msra.mxu0 %v970
        %1144 = vmatprep.subr.bf16.mxu0 %v979
        %1145 = vmatpush1.bf16.msra.mxu0 %v978
        %1146 = vmatprep.mubr.bf16.mxu0 %v471
        %1147 = vmatmul.mubr.bf16.gmra.mrb[0].mxu0 %v470
        %v1148 = vpop.f32.mrb[0].mxu0
        %v1149 = vadd.f32 %v430, %v1148
        %v1150 = vpop.f32.mrb[0].mxu0
        %v1151 = vadd.f32 %v434, %v1150
        %v1152 = vpop.f32.mrb[0].mxu0
        %v1153 = vpop.f32.mrb[0].mxu0
        %1154 = vdwg.mxu0
        %1155 = vmatprep.subr.bf16.mxu0 %v861
        %1156 = vmatpush1.bf16.msra.mxu0 %v860
        %1157 = vmatprep.subr.bf16.mxu0 %v869
        %1158 = vmatpush1.bf16.msra.mxu0 %v868
        %1159 = vmatprep.subr.bf16.mxu0 %v877
        %1160 = vmatpush1.bf16.msra.mxu0 %v876
        %1161 = vmatprep.subr.bf16.mxu0 %v885
        %1162 = vmatpush1.bf16.msra.mxu0 %v884
        %1163 = vmatprep.subr.bf16.mxu0 %v893
        %1164 = vmatpush1.bf16.msra.mxu0 %v892
        %1165 = vmatprep.subr.bf16.mxu0 %v901
        %1166 = vmatpush1.bf16.msra.mxu0 %v900
        %1167 = vmatprep.subr.bf16.mxu0 %v909
        %1168 = vmatpush1.bf16.msra.mxu0 %v908
        %1169 = vmatprep.subr.bf16.mxu0 %v917
        %1170 = vmatpush1.bf16.msra.mxu0 %v916
        %1171 = vmatprep.subr.bf16.mxu0 %v925
        %1172 = vmatpush1.bf16.msra.mxu0 %v924
        %1173 = vmatprep.subr.bf16.mxu0 %v933
        %1174 = vmatpush1.bf16.msra.mxu0 %v932
        %1175 = vmatprep.subr.bf16.mxu0 %v941
        %1176 = vmatpush1.bf16.msra.mxu0 %v940
        %1177 = vmatprep.subr.bf16.mxu0 %v949
        %1178 = vmatpush1.bf16.msra.mxu0 %v948
        %1179 = vmatprep.subr.bf16.mxu0 %v957
        %1180 = vmatpush1.bf16.msra.mxu0 %v956
        %1181 = vmatprep.subr.bf16.mxu0 %v965
        %1182 = vmatpush1.bf16.msra.mxu0 %v964
        %1183 = vmatprep.subr.bf16.mxu0 %v973
        %1184 = vmatpush1.bf16.msra.mxu0 %v972
        %1185 = vmatprep.subr.bf16.mxu0 %v981
        %1186 = vmatpush1.bf16.msra.mxu0 %v980
        %1187 = vmatprep.mubr.bf16.mxu0 %v471
        %1188 = vmatmul.mubr.bf16.gmra.mrb[0].mxu0 %v470
        %v1189 = vpop.f32.mrb[0].mxu0
        %v1190 = vadd.f32 %v438, %v1189
        %v1191 = vpop.f32.mrb[0].mxu0
        %v1192 = vadd.f32 %v442, %v1191
        %v1193 = vpop.f32.mrb[0].mxu0
        %v1194 = vpop.f32.mrb[0].mxu0
        %1195 = vdwg.mxu0
        %1196 = vmatprep.subr.bf16.mxu0 %v863
        %1197 = vmatpush1.bf16.msra.mxu0 %v862
        %1198 = vmatprep.subr.bf16.mxu0 %v871
        %1199 = vmatpush1.bf16.msra.mxu0 %v870
        %1200 = vmatprep.subr.bf16.mxu0 %v879
        %1201 = vmatpush1.bf16.msra.mxu0 %v878
        %1202 = vmatprep.subr.bf16.mxu0 %v887
        %1203 = vmatpush1.bf16.msra.mxu0 %v886
        %1204 = vmatprep.subr.bf16.mxu0 %v895
        %1205 = vmatpush1.bf16.msra.mxu0 %v894
        %1206 = vmatprep.subr.bf16.mxu0 %v903
        %1207 = vmatpush1.bf16.msra.mxu0 %v902
        %1208 = vmatprep.subr.bf16.mxu0 %v911
        %1209 = vmatpush1.bf16.msra.mxu0 %v910
        %1210 = vmatprep.subr.bf16.mxu0 %v919
        %1211 = vmatpush1.bf16.msra.mxu0 %v918
        %1212 = vmatprep.subr.bf16.mxu0 %v927
        %1213 = vmatpush1.bf16.msra.mxu0 %v926
        %1214 = vmatprep.subr.bf16.mxu0 %v935
        %1215 = vmatpush1.bf16.msra.mxu0 %v934
        %1216 = vmatprep.subr.bf16.mxu0 %v943
        %1217 = vmatpush1.bf16.msra.mxu0 %v942
        %1218 = vmatprep.subr.bf16.mxu0 %v951
        %1219 = vmatpush1.bf16.msra.mxu0 %v950
        %1220 = vmatprep.subr.bf16.mxu0 %v959
        %1221 = vmatpush1.bf16.msra.mxu0 %v958
        %1222 = vmatprep.subr.bf16.mxu0 %v967
        %1223 = vmatpush1.bf16.msra.mxu0 %v966
        %1224 = vmatprep.subr.bf16.mxu0 %v975
        %1225 = vmatpush1.bf16.msra.mxu0 %v974
        %1226 = vmatprep.subr.bf16.mxu0 %v983
        %1227 = vmatpush1.bf16.msra.mxu0 %v982
        %1228 = vmatprep.mubr.bf16.mxu0 %v471
        %1229 = vmatmul.mubr.bf16.gmra.mrb[0].mxu0 %v470
        %v1230 = vpop.f32.mrb[0].mxu0
        %v1231 = vadd.f32 %v446, %v1230
        %v1232 = vpop.f32.mrb[0].mxu0
        %v1233 = vadd.f32 %v450, %v1232
        %v1234 = vpop.f32.mrb[0].mxu0
        %v1235 = vpop.f32.mrb[0].mxu0
        %1236 = vdwg.mxu0
        %1237 = vmatprep.subr.bf16.mxu0 %v865
        %1238 = vmatpush1.bf16.msra.mxu0 %v864
        %1239 = vmatprep.subr.bf16.mxu0 %v873
        %1240 = vmatpush1.bf16.msra.mxu0 %v872
        %1241 = vmatprep.subr.bf16.mxu0 %v881
        %1242 = vmatpush1.bf16.msra.mxu0 %v880
        %1243 = vmatprep.subr.bf16.mxu0 %v889
        %1244 = vmatpush1.bf16.msra.mxu0 %v888
        %1245 = vmatprep.subr.bf16.mxu0 %v897
        %1246 = vmatpush1.bf16.msra.mxu0 %v896
        %1247 = vmatprep.subr.bf16.mxu0 %v905
        %1248 = vmatpush1.bf16.msra.mxu0 %v904
        %1249 = vmatprep.subr.bf16.mxu0 %v913
        %1250 = vmatpush1.bf16.msra.mxu0 %v912
        %1251 = vmatprep.subr.bf16.mxu0 %v921
        %1252 = vmatpush1.bf16.msra.mxu0 %v920
        %1253 = vmatprep.subr.bf16.mxu0 %v929
        %1254 = vmatpush1.bf16.msra.mxu0 %v928
        %1255 = vmatprep.subr.bf16.mxu0 %v937
        %1256 = vmatpush1.bf16.msra.mxu0 %v936
        %1257 = vmatprep.subr.bf16.mxu0 %v945
        %1258 = vmatpush1.bf16.msra.mxu0 %v944
        %1259 = vmatprep.subr.bf16.mxu0 %v953
        %1260 = vmatpush1.bf16.msra.mxu0 %v952
        %1261 = vmatprep.subr.bf16.mxu0 %v961
        %1262 = vmatpush1.bf16.msra.mxu0 %v960
        %1263 = vmatprep.subr.bf16.mxu0 %v969
        %1264 = vmatpush1.bf16.msra.mxu0 %v968
        %1265 = vmatprep.subr.bf16.mxu0 %v977
        %1266 = vmatpush1.bf16.msra.mxu0 %v976
        %1267 = vmatprep.subr.bf16.mxu0 %v985
        %1268 = vmatpush1.bf16.msra.mxu0 %v984
        %1269 = vmatprep.mubr.bf16.mxu0 %v471
        %1270 = vmatmul.mubr.bf16.gmra.mrb[0].mxu0 %v470
        %v1271 = vpop.f32.mrb[0].mxu0
        %v1272 = vadd.f32 %v454, %v1271
        %v1273 = vpop.f32.mrb[0].mxu0
        %v1274 = vadd.f32 %v458, %v1273
        %v1275 = vpop.f32.mrb[0].mxu0
        %v1276 = vpop.f32.mrb[0].mxu0
        %1277 = vdwg.mxu0
        %v1278 = vmul.f32 %v1149, 0.5
        %v1279 = vmul.f32 %v1151, 0.5
        %v1280 = vmul.f32 %v1190, 0.5
        %v1281 = vmul.f32 %v1192, 0.5
        %v1282 = vmul.f32 %v1231, 0.5
        %v1283 = vmul.f32 %v1233, 0.5
        %v1284 = vmul.f32 %v1272, 0.5
        %v1285 = vmul.f32 %v1274, 0.5
        %v1286 = vmul.f32 %v1149, 0.70710677
        %v1287 = vmul.f32 %v1151, 0.70710677
        %v1288 = vmul.f32 %v1190, 0.70710677
        %v1289 = vmul.f32 %v1192, 0.70710677
        %v1290 = vmul.f32 %v1231, 0.70710677
        %v1291 = vmul.f32 %v1233, 0.70710677
        %v1292 = vmul.f32 %v1272, 0.70710677
        %v1293 = vmul.f32 %v1274, 0.70710677
        %v1294 = verf.f32.pop %v1286
        %v1295 = verf.f32.pop %v1287
        %v1296 = verf.f32.pop %v1288
        %v1297 = verf.f32.pop %v1289
        %v1298 = verf.f32.pop %v1290
        %v1299 = verf.f32.pop %v1291
        %v1300 = verf.f32.pop %v1292
        %v1301 = verf.f32.pop %v1293
        %v1302 = vadd.f32 %v1294, 1.0
        %v1303 = vadd.f32 %v1295, 1.0
        %v1304 = vadd.f32 %v1296, 1.0
        %v1305 = vadd.f32 %v1297, 1.0
        %v1306 = vadd.f32 %v1298, 1.0
        %v1307 = vadd.f32 %v1299, 1.0
        %v1308 = vadd.f32 %v1300, 1.0
        %v1309 = vadd.f32 %v1301, 1.0
        %v1310 = vmul.f32 %v1278, %v1302
        %v1311 = vmul.f32 %v1279, %v1303
        %v1312 = vmul.f32 %v1280, %v1304
        %v1313 = vmul.f32 %v1281, %v1305
        %v1314 = vmul.f32 %v1282, %v1306
        %v1315 = vmul.f32 %v1283, %v1307
        %v1316 = vmul.f32 %v1284, %v1308
        %v1317 = vmul.f32 %v1285, %v1309
        %v1318 = vld [vmem:[%s263] sm:$0xf]
        %v1319 = vld [vmem:[%s263 + $0x4] sm:$0xf]
        %v1320 = vld [vmem:[%s263 + $0x8] sm:$0xf]
        %v1321 = vld [vmem:[%s263 + $0xc] sm:$0xf]
        %v1322 = vld [vmem:[%s263 + $0x10] sm:$0xf]
        %v1323 = vld [vmem:[%s263 + $0x14] sm:$0xf]
        %v1324 = vld [vmem:[%s263 + $0x18] sm:$0xf]
        %v1325 = vld [vmem:[%s263 + $0x1c] sm:$0xf]
        %v1326 = vld [vmem:[%s263 + $0x20] sm:$0xf]
        %v1327 = vld [vmem:[%s263 + $0x24] sm:$0xf]
        %v1328 = vld [vmem:[%s263 + $0x28] sm:$0xf]
        %v1329 = vld [vmem:[%s263 + $0x2c] sm:$0xf]
        %v1330 = vld [vmem:[%s263 + $0x30] sm:$0xf]
        %v1331 = vld [vmem:[%s263 + $0x34] sm:$0xf]
        %v1332 = vld [vmem:[%s263 + $0x38] sm:$0xf]
        %v1333 = vld [vmem:[%s263 + $0x3c] sm:$0xf]
        %v1334 = vld [vmem:[%s263 + $0x40] sm:$0xf]
        %v1335 = vld [vmem:[%s263 + $0x44] sm:$0xf]
        %v1336 = vld [vmem:[%s263 + $0x48] sm:$0xf]
        %v1337 = vld [vmem:[%s263 + $0x4c] sm:$0xf]
        %v1338 = vld [vmem:[%s263 + $0x50] sm:$0xf]
        %v1339 = vld [vmem:[%s263 + $0x54] sm:$0xf]
        %v1340 = vld [vmem:[%s263 + $0x58] sm:$0xf]
        %v1341 = vld [vmem:[%s263 + $0x5c] sm:$0xf]
        %v1342 = vld [vmem:[%s263 + $0x60] sm:$0xf]
        %v1343 = vld [vmem:[%s263 + $0x64] sm:$0xf]
        %v1344 = vld [vmem:[%s263 + $0x68] sm:$0xf]
        %v1345 = vld [vmem:[%s263 + $0x6c] sm:$0xf]
        %v1346 = vld [vmem:[%s263 + $0x70] sm:$0xf]
        %v1347 = vld [vmem:[%s263 + $0x74] sm:$0xf]
        %v1348 = vld [vmem:[%s263 + $0x78] sm:$0xf]
        %v1349 = vld [vmem:[%s263 + $0x7c] sm:$0xf]
        %v1350 = vld [vmem:[%s263 + $0x80] sm:$0xf]
        %v1351 = vld [vmem:[%s263 + $0x84] sm:$0xf]
        %v1352 = vld [vmem:[%s263 + $0x88] sm:$0xf]
        %v1353 = vld [vmem:[%s263 + $0x8c] sm:$0xf]
        %v1354 = vld [vmem:[%s263 + $0x90] sm:$0xf]
        %v1355 = vld [vmem:[%s263 + $0x94] sm:$0xf]
        %v1356 = vld [vmem:[%s263 + $0x98] sm:$0xf]
        %v1357 = vld [vmem:[%s263 + $0x9c] sm:$0xf]
        %v1358 = vld [vmem:[%s263 + $0xa0] sm:$0xf]
        %v1359 = vld [vmem:[%s263 + $0xa4] sm:$0xf]
        %v1360 = vld [vmem:[%s263 + $0xa8] sm:$0xf]
        %v1361 = vld [vmem:[%s263 + $0xac] sm:$0xf]
        %v1362 = vld [vmem:[%s263 + $0xb0] sm:$0xf]
        %v1363 = vld [vmem:[%s263 + $0xb4] sm:$0xf]
        %v1364 = vld [vmem:[%s263 + $0xb8] sm:$0xf]
        %v1365 = vld [vmem:[%s263 + $0xbc] sm:$0xf]
        %v1366 = vld [vmem:[%s263 + $0xc0] sm:$0xf]
        %v1367 = vld [vmem:[%s263 + $0xc4] sm:$0xf]
        %v1368 = vld [vmem:[%s263 + $0xc8] sm:$0xf]
        %v1369 = vld [vmem:[%s263 + $0xcc] sm:$0xf]
        %v1370 = vld [vmem:[%s263 + $0xd0] sm:$0xf]
        %v1371 = vld [vmem:[%s263 + $0xd4] sm:$0xf]
        %v1372 = vld [vmem:[%s263 + $0xd8] sm:$0xf]
        %v1373 = vld [vmem:[%s263 + $0xdc] sm:$0xf]
        %v1374 = vld [vmem:[%s263 + $0xe0] sm:$0xf]
        %v1375 = vld [vmem:[%s263 + $0xe4] sm:$0xf]
        %v1376 = vld [vmem:[%s263 + $0xe8] sm:$0xf]
        %v1377 = vld [vmem:[%s263 + $0xec] sm:$0xf]
        %v1378 = vld [vmem:[%s263 + $0xf0] sm:$0xf]
        %v1379 = vld [vmem:[%s263 + $0xf4] sm:$0xf]
        %v1380 = vld [vmem:[%s263 + $0xf8] sm:$0xf]
        %v1381 = vld [vmem:[%s263 + $0xfc] sm:$0xf]
        %v1382 = vld [vmem:[%s263 + $0x100] sm:$0xf]
        %v1383 = vld [vmem:[%s263 + $0x104] sm:$0xf]
        %v1384 = vld [vmem:[%s263 + $0x108] sm:$0xf]
        %v1385 = vld [vmem:[%s263 + $0x10c] sm:$0xf]
        %v1386 = vld [vmem:[%s263 + $0x110] sm:$0xf]
        %v1387 = vld [vmem:[%s263 + $0x114] sm:$0xf]
        %v1388 = vld [vmem:[%s263 + $0x118] sm:$0xf]
        %v1389 = vld [vmem:[%s263 + $0x11c] sm:$0xf]
        %v1390 = vld [vmem:[%s263 + $0x120] sm:$0xf]
        %v1391 = vld [vmem:[%s263 + $0x124] sm:$0xf]
        %v1392 = vld [vmem:[%s263 + $0x128] sm:$0xf]
        %v1393 = vld [vmem:[%s263 + $0x12c] sm:$0xf]
        %v1394 = vld [vmem:[%s263 + $0x130] sm:$0xf]
        %v1395 = vld [vmem:[%s263 + $0x134] sm:$0xf]
        %v1396 = vld [vmem:[%s263 + $0x138] sm:$0xf]
        %v1397 = vld [vmem:[%s263 + $0x13c] sm:$0xf]
        %v1398 = vld [vmem:[%s263 + $0x140] sm:$0xf]
        %v1399 = vld [vmem:[%s263 + $0x144] sm:$0xf]
        %v1400 = vld [vmem:[%s263 + $0x148] sm:$0xf]
        %v1401 = vld [vmem:[%s263 + $0x14c] sm:$0xf]
        %v1402 = vld [vmem:[%s263 + $0x150] sm:$0xf]
        %v1403 = vld [vmem:[%s263 + $0x154] sm:$0xf]
        %v1404 = vld [vmem:[%s263 + $0x158] sm:$0xf]
        %v1405 = vld [vmem:[%s263 + $0x15c] sm:$0xf]
        %v1406 = vld [vmem:[%s263 + $0x160] sm:$0xf]
        %v1407 = vld [vmem:[%s263 + $0x164] sm:$0xf]
        %v1408 = vld [vmem:[%s263 + $0x168] sm:$0xf]
        %v1409 = vld [vmem:[%s263 + $0x16c] sm:$0xf]
        %v1410 = vld [vmem:[%s263 + $0x170] sm:$0xf]
        %v1411 = vld [vmem:[%s263 + $0x174] sm:$0xf]
        %v1412 = vld [vmem:[%s263 + $0x178] sm:$0xf]
        %v1413 = vld [vmem:[%s263 + $0x17c] sm:$0xf]
        %v1414 = vld [vmem:[%s263 + $0x180] sm:$0xf]
        %v1415 = vld [vmem:[%s263 + $0x184] sm:$0xf]
        %v1416 = vld [vmem:[%s263 + $0x188] sm:$0xf]
        %v1417 = vld [vmem:[%s263 + $0x18c] sm:$0xf]
        %v1418 = vld [vmem:[%s263 + $0x190] sm:$0xf]
        %v1419 = vld [vmem:[%s263 + $0x194] sm:$0xf]
        %v1420 = vld [vmem:[%s263 + $0x198] sm:$0xf]
        %v1421 = vld [vmem:[%s263 + $0x19c] sm:$0xf]
        %v1422 = vld [vmem:[%s263 + $0x1a0] sm:$0xf]
        %v1423 = vld [vmem:[%s263 + $0x1a4] sm:$0xf]
        %v1424 = vld [vmem:[%s263 + $0x1a8] sm:$0xf]
        %v1425 = vld [vmem:[%s263 + $0x1ac] sm:$0xf]
        %v1426 = vld [vmem:[%s263 + $0x1b0] sm:$0xf]
        %v1427 = vld [vmem:[%s263 + $0x1b4] sm:$0xf]
        %v1428 = vld [vmem:[%s263 + $0x1b8] sm:$0xf]
        %v1429 = vld [vmem:[%s263 + $0x1bc] sm:$0xf]
        %v1430 = vld [vmem:[%s263 + $0x1c0] sm:$0xf]
        %v1431 = vld [vmem:[%s263 + $0x1c4] sm:$0xf]
        %v1432 = vld [vmem:[%s263 + $0x1c8] sm:$0xf]
        %v1433 = vld [vmem:[%s263 + $0x1cc] sm:$0xf]
        %v1434 = vld [vmem:[%s263 + $0x1d0] sm:$0xf]
        %v1435 = vld [vmem:[%s263 + $0x1d4] sm:$0xf]
        %v1436 = vld [vmem:[%s263 + $0x1d8] sm:$0xf]
        %v1437 = vld [vmem:[%s263 + $0x1dc] sm:$0xf]
        %v1438 = vld [vmem:[%s263 + $0x1e0] sm:$0xf]
        %v1439 = vld [vmem:[%s263 + $0x1e4] sm:$0xf]
        %v1440 = vld [vmem:[%s263 + $0x1e8] sm:$0xf]
        %v1441 = vld [vmem:[%s263 + $0x1ec] sm:$0xf]
        %v1442 = vld [vmem:[%s263 + $0x1f0] sm:$0xf]
        %v1443 = vld [vmem:[%s263 + $0x1f4] sm:$0xf]
        %v1444 = vld [vmem:[%s263 + $0x1f8] sm:$0xf]
        %v1445 = vld [vmem:[%s263 + $0x1fc] sm:$0xf]
        %v1446 = vunpack.c.l.bf16 %v1318
        %v1447 = vunpack.c.l.bf16 %v1319
        %v1448 = vunpack.c.l.bf16 %v1320
        %v1449 = vunpack.c.l.bf16 %v1321
        %v1450 = vunpack.c.l.bf16 %v1322
        %v1451 = vunpack.c.l.bf16 %v1323
        %v1452 = vunpack.c.l.bf16 %v1324
        %v1453 = vunpack.c.l.bf16 %v1325
        %v1454 = vunpack.c.l.bf16 %v1326
        %v1455 = vunpack.c.l.bf16 %v1327
        %v1456 = vunpack.c.l.bf16 %v1328
        %v1457 = vunpack.c.l.bf16 %v1329
        %v1458 = vunpack.c.l.bf16 %v1330
        %v1459 = vunpack.c.l.bf16 %v1331
        %v1460 = vunpack.c.l.bf16 %v1332
        %v1461 = vunpack.c.l.bf16 %v1333
        %v1462 = vunpack.c.l.bf16 %v1334
        %v1463 = vunpack.c.l.bf16 %v1335
        %v1464 = vunpack.c.l.bf16 %v1336
        %v1465 = vunpack.c.l.bf16 %v1337
        %v1466 = vunpack.c.l.bf16 %v1338
        %v1467 = vunpack.c.l.bf16 %v1339
        %v1468 = vunpack.c.l.bf16 %v1340
        %v1469 = vunpack.c.l.bf16 %v1341
        %v1470 = vunpack.c.l.bf16 %v1342
        %v1471 = vunpack.c.l.bf16 %v1343
        %v1472 = vunpack.c.l.bf16 %v1344
        %v1473 = vunpack.c.l.bf16 %v1345
        %v1474 = vunpack.c.l.bf16 %v1346
        %v1475 = vunpack.c.l.bf16 %v1347
        %v1476 = vunpack.c.l.bf16 %v1348
        %v1477 = vunpack.c.l.bf16 %v1349
        %v1478 = vunpack.c.l.bf16 %v1350
        %v1479 = vunpack.c.l.bf16 %v1351
        %v1480 = vunpack.c.l.bf16 %v1352
        %v1481 = vunpack.c.l.bf16 %v1353
        %v1482 = vunpack.c.l.bf16 %v1354
        %v1483 = vunpack.c.l.bf16 %v1355
        %v1484 = vunpack.c.l.bf16 %v1356
        %v1485 = vunpack.c.l.bf16 %v1357
        %v1486 = vunpack.c.l.bf16 %v1358
        %v1487 = vunpack.c.l.bf16 %v1359
        %v1488 = vunpack.c.l.bf16 %v1360
        %v1489 = vunpack.c.l.bf16 %v1361
        %v1490 = vunpack.c.l.bf16 %v1362
        %v1491 = vunpack.c.l.bf16 %v1363
        %v1492 = vunpack.c.l.bf16 %v1364
        %v1493 = vunpack.c.l.bf16 %v1365
        %v1494 = vunpack.c.l.bf16 %v1366
        %v1495 = vunpack.c.l.bf16 %v1367
        %v1496 = vunpack.c.l.bf16 %v1368
        %v1497 = vunpack.c.l.bf16 %v1369
        %v1498 = vunpack.c.l.bf16 %v1370
        %v1499 = vunpack.c.l.bf16 %v1371
        %v1500 = vunpack.c.l.bf16 %v1372
        %v1501 = vunpack.c.l.bf16 %v1373
        %v1502 = vunpack.c.l.bf16 %v1374
        %v1503 = vunpack.c.l.bf16 %v1375
        %v1504 = vunpack.c.l.bf16 %v1376
        %v1505 = vunpack.c.l.bf16 %v1377
        %v1506 = vunpack.c.l.bf16 %v1378
        %v1507 = vunpack.c.l.bf16 %v1379
        %v1508 = vunpack.c.l.bf16 %v1380
        %v1509 = vunpack.c.l.bf16 %v1381
        %v1510 = vunpack.c.l.bf16 %v1382
        %v1511 = vunpack.c.l.bf16 %v1383
        %v1512 = vunpack.c.l.bf16 %v1384
        %v1513 = vunpack.c.l.bf16 %v1385
        %v1514 = vunpack.c.l.bf16 %v1386
        %v1515 = vunpack.c.l.bf16 %v1387
        %v1516 = vunpack.c.l.bf16 %v1388
        %v1517 = vunpack.c.l.bf16 %v1389
        %v1518 = vunpack.c.l.bf16 %v1390
        %v1519 = vunpack.c.l.bf16 %v1391
        %v1520 = vunpack.c.l.bf16 %v1392
        %v1521 = vunpack.c.l.bf16 %v1393
        %v1522 = vunpack.c.l.bf16 %v1394
        %v1523 = vunpack.c.l.bf16 %v1395
        %v1524 = vunpack.c.l.bf16 %v1396
        %v1525 = vunpack.c.l.bf16 %v1397
        %v1526 = vunpack.c.l.bf16 %v1398
        %v1527 = vunpack.c.l.bf16 %v1399
        %v1528 = vunpack.c.l.bf16 %v1400
        %v1529 = vunpack.c.l.bf16 %v1401
        %v1530 = vunpack.c.l.bf16 %v1402
        %v1531 = vunpack.c.l.bf16 %v1403
        %v1532 = vunpack.c.l.bf16 %v1404
        %v1533 = vunpack.c.l.bf16 %v1405
        %v1534 = vunpack.c.l.bf16 %v1406
        %v1535 = vunpack.c.l.bf16 %v1407
        %v1536 = vunpack.c.l.bf16 %v1408
        %v1537 = vunpack.c.l.bf16 %v1409
        %v1538 = vunpack.c.l.bf16 %v1410
        %v1539 = vunpack.c.l.bf16 %v1411
        %v1540 = vunpack.c.l.bf16 %v1412
        %v1541 = vunpack.c.l.bf16 %v1413
        %v1542 = vunpack.c.l.bf16 %v1414
        %v1543 = vunpack.c.l.bf16 %v1415
        %v1544 = vunpack.c.l.bf16 %v1416
        %v1545 = vunpack.c.l.bf16 %v1417
        %v1546 = vunpack.c.l.bf16 %v1418
        %v1547 = vunpack.c.l.bf16 %v1419
        %v1548 = vunpack.c.l.bf16 %v1420
        %v1549 = vunpack.c.l.bf16 %v1421
        %v1550 = vunpack.c.l.bf16 %v1422
        %v1551 = vunpack.c.l.bf16 %v1423
        %v1552 = vunpack.c.l.bf16 %v1424
        %v1553 = vunpack.c.l.bf16 %v1425
        %v1554 = vunpack.c.l.bf16 %v1426
        %v1555 = vunpack.c.l.bf16 %v1427
        %v1556 = vunpack.c.l.bf16 %v1428
        %v1557 = vunpack.c.l.bf16 %v1429
        %v1558 = vunpack.c.l.bf16 %v1430
        %v1559 = vunpack.c.l.bf16 %v1431
        %v1560 = vunpack.c.l.bf16 %v1432
        %v1561 = vunpack.c.l.bf16 %v1433
        %v1562 = vunpack.c.l.bf16 %v1434
        %v1563 = vunpack.c.l.bf16 %v1435
        %v1564 = vunpack.c.l.bf16 %v1436
        %v1565 = vunpack.c.l.bf16 %v1437
        %v1566 = vunpack.c.l.bf16 %v1438
        %v1567 = vunpack.c.l.bf16 %v1439
        %v1568 = vunpack.c.l.bf16 %v1440
        %v1569 = vunpack.c.l.bf16 %v1441
        %v1570 = vunpack.c.l.bf16 %v1442
        %v1571 = vunpack.c.l.bf16 %v1443
        %v1572 = vunpack.c.l.bf16 %v1444
        %v1573 = vunpack.c.l.bf16 %v1445
        %v1574 = vld [vmem:[%s295] sm:$0x1]
        %v1576 = vlaneseq
        %v1577 = vshrl.u32 %v1576, 7
        %v1578 = vsub.s32 0, %v1577
        %v1579 = vrot.slane %v1574, %v1578
        %1581 = vmatprep.subr.mxu0 0.0
        %1582 = vmatpush1.msra.mxu0 %v1446
        %1583 = vmatprep.subr.mxu0 0.0
        %1584 = vmatpush1.msra.mxu0 %v1447
        %1585 = vmatprep.subr.mxu0 0.0
        %1586 = vmatpush1.msra.mxu0 %v1448
        %1587 = vmatprep.subr.mxu0 0.0
        %1588 = vmatpush1.msra.mxu0 %v1449
        %1589 = vmatprep.subr.mxu0 0.0
        %1590 = vmatpush1.msra.mxu0 %v1450
        %1591 = vmatprep.subr.mxu0 0.0
        %1592 = vmatpush1.msra.mxu0 %v1451
        %1593 = vmatprep.subr.mxu0 0.0
        %1594 = vmatpush1.msra.mxu0 %v1452
        %1595 = vmatprep.subr.mxu0 0.0
        %1596 = vmatpush1.msra.mxu0 %v1453
        %1597 = vmatprep.subr.mxu0 0.0
        %1598 = vmatpush1.msra.mxu0 %v1454
        %1599 = vmatprep.subr.mxu0 0.0
        %1600 = vmatpush1.msra.mxu0 %v1455
        %1601 = vmatprep.subr.mxu0 0.0
        %1602 = vmatpush1.msra.mxu0 %v1456
        %1603 = vmatprep.subr.mxu0 0.0
        %1604 = vmatpush1.msra.mxu0 %v1457
        %1605 = vmatprep.subr.mxu0 0.0
        %1606 = vmatpush1.msra.mxu0 %v1458
        %1607 = vmatprep.subr.mxu0 0.0
        %1608 = vmatpush1.msra.mxu0 %v1459
        %1609 = vmatprep.subr.mxu0 0.0
        %1610 = vmatpush1.msra.mxu0 %v1460
        %1611 = vmatprep.subr.mxu0 0.0
        %1612 = vmatpush1.msra.mxu0 %v1461
        %1613 = vmatprep.subr.mxu0 0.0
        %1614 = vmatpush1.msra.mxu0 %v1462
        %1615 = vmatprep.subr.mxu0 0.0
        %1616 = vmatpush1.msra.mxu0 %v1463
        %1617 = vmatprep.subr.mxu0 0.0
        %1618 = vmatpush1.msra.mxu0 %v1464
        %1619 = vmatprep.subr.mxu0 0.0
        %1620 = vmatpush1.msra.mxu0 %v1465
        %1621 = vmatprep.subr.mxu0 0.0
        %1622 = vmatpush1.msra.mxu0 %v1466
        %1623 = vmatprep.subr.mxu0 0.0
        %1624 = vmatpush1.msra.mxu0 %v1467
        %1625 = vmatprep.subr.mxu0 0.0
        %1626 = vmatpush1.msra.mxu0 %v1468
        %1627 = vmatprep.subr.mxu0 0.0
        %1628 = vmatpush1.msra.mxu0 %v1469
        %1629 = vmatprep.subr.mxu0 0.0
        %1630 = vmatpush1.msra.mxu0 %v1470
        %1631 = vmatprep.subr.mxu0 0.0
        %1632 = vmatpush1.msra.mxu0 %v1471
        %1633 = vmatprep.subr.mxu0 0.0
        %1634 = vmatpush1.msra.mxu0 %v1472
        %1635 = vmatprep.subr.mxu0 0.0
        %1636 = vmatpush1.msra.mxu0 %v1473
        %1637 = vmatprep.subr.mxu0 0.0
        %1638 = vmatpush1.msra.mxu0 %v1474
        %1639 = vmatprep.subr.mxu0 0.0
        %1640 = vmatpush1.msra.mxu0 %v1475
        %1641 = vmatprep.subr.mxu0 0.0
        %1642 = vmatpush1.msra.mxu0 %v1476
        %1643 = vmatprep.subr.mxu0 0.0
        %1644 = vmatpush1.msra.mxu0 %v1477
        %1645 = vmatprep.mubr.f32.mxu0 %v1311
        %1646 = vmatmul.mubr.f32.gmra.mrb[0].mxu0 %v1310
        %v1647 = vpop.f32.mrb[0].mxu0
        %v1648 = vadd.f32 %v1579, %v1647
        %v1649 = vpop.f32.mrb[0].mxu0
        %1650 = vdwg.mxu0
        %1651 = vmatprep.subr.mxu0 0.0
        %1652 = vmatpush1.msra.mxu0 %v1478
        %1653 = vmatprep.subr.mxu0 0.0
        %1654 = vmatpush1.msra.mxu0 %v1479
        %1655 = vmatprep.subr.mxu0 0.0
        %1656 = vmatpush1.msra.mxu0 %v1480
        %1657 = vmatprep.subr.mxu0 0.0
        %1658 = vmatpush1.msra.mxu0 %v1481
        %1659 = vmatprep.subr.mxu0 0.0
        %1660 = vmatpush1.msra.mxu0 %v1482
        %1661 = vmatprep.subr.mxu0 0.0
        %1662 = vmatpush1.msra.mxu0 %v1483
        %1663 = vmatprep.subr.mxu0 0.0
        %1664 = vmatpush1.msra.mxu0 %v1484
        %1665 = vmatprep.subr.mxu0 0.0
        %1666 = vmatpush1.msra.mxu0 %v1485
        %1667 = vmatprep.subr.mxu0 0.0
        %1668 = vmatpush1.msra.mxu0 %v1486
        %1669 = vmatprep.subr.mxu0 0.0
        %1670 = vmatpush1.msra.mxu0 %v1487
        %1671 = vmatprep.subr.mxu0 0.0
        %1672 = vmatpush1.msra.mxu0 %v1488
        %1673 = vmatprep.subr.mxu0 0.0
        %1674 = vmatpush1.msra.mxu0 %v1489
        %1675 = vmatprep.subr.mxu0 0.0
        %1676 = vmatpush1.msra.mxu0 %v1490
        %1677 = vmatprep.subr.mxu0 0.0
        %1678 = vmatpush1.msra.mxu0 %v1491
        %1679 = vmatprep.subr.mxu0 0.0
        %1680 = vmatpush1.msra.mxu0 %v1492
        %1681 = vmatprep.subr.mxu0 0.0
        %1682 = vmatpush1.msra.mxu0 %v1493
        %1683 = vmatprep.subr.mxu0 0.0
        %1684 = vmatpush1.msra.mxu0 %v1494
        %1685 = vmatprep.subr.mxu0 0.0
        %1686 = vmatpush1.msra.mxu0 %v1495
        %1687 = vmatprep.subr.mxu0 0.0
        %1688 = vmatpush1.msra.mxu0 %v1496
        %1689 = vmatprep.subr.mxu0 0.0
        %1690 = vmatpush1.msra.mxu0 %v1497
        %1691 = vmatprep.subr.mxu0 0.0
        %1692 = vmatpush1.msra.mxu0 %v1498
        %1693 = vmatprep.subr.mxu0 0.0
        %1694 = vmatpush1.msra.mxu0 %v1499
        %1695 = vmatprep.subr.mxu0 0.0
        %1696 = vmatpush1.msra.mxu0 %v1500
        %1697 = vmatprep.subr.mxu0 0.0
        %1698 = vmatpush1.msra.mxu0 %v1501
        %1699 = vmatprep.subr.mxu0 0.0
        %1700 = vmatpush1.msra.mxu0 %v1502
        %1701 = vmatprep.subr.mxu0 0.0
        %1702 = vmatpush1.msra.mxu0 %v1503
        %1703 = vmatprep.subr.mxu0 0.0
        %1704 = vmatpush1.msra.mxu0 %v1504
        %1705 = vmatprep.subr.mxu0 0.0
        %1706 = vmatpush1.msra.mxu0 %v1505
        %1707 = vmatprep.subr.mxu0 0.0
        %1708 = vmatpush1.msra.mxu0 %v1506
        %1709 = vmatprep.subr.mxu0 0.0
        %1710 = vmatpush1.msra.mxu0 %v1507
        %1711 = vmatprep.subr.mxu0 0.0
        %1712 = vmatpush1.msra.mxu0 %v1508
        %1713 = vmatprep.subr.mxu0 0.0
        %1714 = vmatpush1.msra.mxu0 %v1509
        %1715 = vmatprep.mubr.f32.mxu0 %v1313
        %1716 = vmatmul.mubr.f32.gmra.mrb[0].mxu0 %v1312
        %v1717 = vpop.f32.mrb[0].mxu0
        %v1718 = vadd.f32 %v1648, %v1717
        %v1719 = vpop.f32.mrb[0].mxu0
        %1720 = vdwg.mxu0
        %1721 = vmatprep.subr.mxu0 0.0
        %1722 = vmatpush1.msra.mxu0 %v1510
        %1723 = vmatprep.subr.mxu0 0.0
        %1724 = vmatpush1.msra.mxu0 %v1511
        %1725 = vmatprep.subr.mxu0 0.0
        %1726 = vmatpush1.msra.mxu0 %v1512
        %1727 = vmatprep.subr.mxu0 0.0
        %1728 = vmatpush1.msra.mxu0 %v1513
        %1729 = vmatprep.subr.mxu0 0.0
        %1730 = vmatpush1.msra.mxu0 %v1514
        %1731 = vmatprep.subr.mxu0 0.0
        %1732 = vmatpush1.msra.mxu0 %v1515
        %1733 = vmatprep.subr.mxu0 0.0
        %1734 = vmatpush1.msra.mxu0 %v1516
        %1735 = vmatprep.subr.mxu0 0.0
        %1736 = vmatpush1.msra.mxu0 %v1517
        %1737 = vmatprep.subr.mxu0 0.0
        %1738 = vmatpush1.msra.mxu0 %v1518
        %1739 = vmatprep.subr.mxu0 0.0
        %1740 = vmatpush1.msra.mxu0 %v1519
        %1741 = vmatprep.subr.mxu0 0.0
        %1742 = vmatpush1.msra.mxu0 %v1520
        %1743 = vmatprep.subr.mxu0 0.0
        %1744 = vmatpush1.msra.mxu0 %v1521
        %1745 = vmatprep.subr.mxu0 0.0
        %1746 = vmatpush1.msra.mxu0 %v1522
        %1747 = vmatprep.subr.mxu0 0.0
        %1748 = vmatpush1.msra.mxu0 %v1523
        %1749 = vmatprep.subr.mxu0 0.0
        %1750 = vmatpush1.msra.mxu0 %v1524
        %1751 = vmatprep.subr.mxu0 0.0
        %1752 = vmatpush1.msra.mxu0 %v1525
        %1753 = vmatprep.subr.mxu0 0.0
        %1754 = vmatpush1.msra.mxu0 %v1526
        %1755 = vmatprep.subr.mxu0 0.0
        %1756 = vmatpush1.msra.mxu0 %v1527
        %1757 = vmatprep.subr.mxu0 0.0
        %1758 = vmatpush1.msra.mxu0 %v1528
        %1759 = vmatprep.subr.mxu0 0.0
        %1760 = vmatpush1.msra.mxu0 %v1529
        %1761 = vmatprep.subr.mxu0 0.0
        %1762 = vmatpush1.msra.mxu0 %v1530
        %1763 = vmatprep.subr.mxu0 0.0
        %1764 = vmatpush1.msra.mxu0 %v1531
        %1765 = vmatprep.subr.mxu0 0.0
        %1766 = vmatpush1.msra.mxu0 %v1532
        %1767 = vmatprep.subr.mxu0 0.0
        %1768 = vmatpush1.msra.mxu0 %v1533
        %1769 = vmatprep.subr.mxu0 0.0
        %1770 = vmatpush1.msra.mxu0 %v1534
        %1771 = vmatprep.subr.mxu0 0.0
        %1772 = vmatpush1.msra.mxu0 %v1535
        %1773 = vmatprep.subr.mxu0 0.0
        %1774 = vmatpush1.msra.mxu0 %v1536
        %1775 = vmatprep.subr.mxu0 0.0
        %1776 = vmatpush1.msra.mxu0 %v1537
        %1777 = vmatprep.subr.mxu0 0.0
        %1778 = vmatpush1.msra.mxu0 %v1538
        %1779 = vmatprep.subr.mxu0 0.0
        %1780 = vmatpush1.msra.mxu0 %v1539
        %1781 = vmatprep.subr.mxu0 0.0
        %1782 = vmatpush1.msra.mxu0 %v1540
        %1783 = vmatprep.subr.mxu0 0.0
        %1784 = vmatpush1.msra.mxu0 %v1541
        %1785 = vmatprep.mubr.f32.mxu0 %v1315
        %1786 = vmatmul.mubr.f32.gmra.mrb[0].mxu0 %v1314
        %v1787 = vpop.f32.mrb[0].mxu0
        %v1788 = vadd.f32 %v1718, %v1787
        %v1789 = vpop.f32.mrb[0].mxu0
        %1790 = vdwg.mxu0
        %1791 = vmatprep.subr.mxu0 0.0
        %1792 = vmatpush1.msra.mxu0 %v1542
        %1793 = vmatprep.subr.mxu0 0.0
        %1794 = vmatpush1.msra.mxu0 %v1543
        %1795 = vmatprep.subr.mxu0 0.0
        %1796 = vmatpush1.msra.mxu0 %v1544
        %1797 = vmatprep.subr.mxu0 0.0
        %1798 = vmatpush1.msra.mxu0 %v1545
        %1799 = vmatprep.subr.mxu0 0.0
        %1800 = vmatpush1.msra.mxu0 %v1546
        %1801 = vmatprep.subr.mxu0 0.0
        %1802 = vmatpush1.msra.mxu0 %v1547
        %1803 = vmatprep.subr.mxu0 0.0
        %1804 = vmatpush1.msra.mxu0 %v1548
        %1805 = vmatprep.subr.mxu0 0.0
        %1806 = vmatpush1.msra.mxu0 %v1549
        %1807 = vmatprep.subr.mxu0 0.0
        %1808 = vmatpush1.msra.mxu0 %v1550
        %1809 = vmatprep.subr.mxu0 0.0
        %1810 = vmatpush1.msra.mxu0 %v1551
        %1811 = vmatprep.subr.mxu0 0.0
        %1812 = vmatpush1.msra.mxu0 %v1552
        %1813 = vmatprep.subr.mxu0 0.0
        %1814 = vmatpush1.msra.mxu0 %v1553
        %1815 = vmatprep.subr.mxu0 0.0
        %1816 = vmatpush1.msra.mxu0 %v1554
        %1817 = vmatprep.subr.mxu0 0.0
        %1818 = vmatpush1.msra.mxu0 %v1555
        %1819 = vmatprep.subr.mxu0 0.0
        %1820 = vmatpush1.msra.mxu0 %v1556
        %1821 = vmatprep.subr.mxu0 0.0
        %1822 = vmatpush1.msra.mxu0 %v1557
        %1823 = vmatprep.subr.mxu0 0.0
        %1824 = vmatpush1.msra.mxu0 %v1558
        %1825 = vmatprep.subr.mxu0 0.0
        %1826 = vmatpush1.msra.mxu0 %v1559
        %1827 = vmatprep.subr.mxu0 0.0
        %1828 = vmatpush1.msra.mxu0 %v1560
        %1829 = vmatprep.subr.mxu0 0.0
        %1830 = vmatpush1.msra.mxu0 %v1561
        %1831 = vmatprep.subr.mxu0 0.0
        %1832 = vmatpush1.msra.mxu0 %v1562
        %1833 = vmatprep.subr.mxu0 0.0
        %1834 = vmatpush1.msra.mxu0 %v1563
        %1835 = vmatprep.subr.mxu0 0.0
        %1836 = vmatpush1.msra.mxu0 %v1564
        %1837 = vmatprep.subr.mxu0 0.0
        %1838 = vmatpush1.msra.mxu0 %v1565
        %1839 = vmatprep.subr.mxu0 0.0
        %1840 = vmatpush1.msra.mxu0 %v1566
        %1841 = vmatprep.subr.mxu0 0.0
        %1842 = vmatpush1.msra.mxu0 %v1567
        %1843 = vmatprep.subr.mxu0 0.0
        %1844 = vmatpush1.msra.mxu0 %v1568
        %1845 = vmatprep.subr.mxu0 0.0
        %1846 = vmatpush1.msra.mxu0 %v1569
        %1847 = vmatprep.subr.mxu0 0.0
        %1848 = vmatpush1.msra.mxu0 %v1570
        %1849 = vmatprep.subr.mxu0 0.0
        %1850 = vmatpush1.msra.mxu0 %v1571
        %1851 = vmatprep.subr.mxu0 0.0
        %1852 = vmatpush1.msra.mxu0 %v1572
        %1853 = vmatprep.subr.mxu0 0.0
        %1854 = vmatpush1.msra.mxu0 %v1573
        %1855 = vmatprep.mubr.f32.mxu0 %v1317
        %1856 = vmatmul.mubr.f32.gmra.mrb[0].mxu0 %v1316
        %v1857 = vpop.f32.mrb[0].mxu0
        %v1858 = vadd.f32 %v1788, %v1857
        %v1859 = vpop.f32.mrb[0].mxu0
        %1860 = vdwg.mxu0
        %1861 = vst [vmem:[%s292] sm:$0xff] %v1858
        %s1862 = sand.u32 %s147, 1
        %s1863 = scalar_lea.sflag [#allocation4], %s1862
        %s1864 = sand.u32 %s147, 1
        %s1865 = smul.addr %s1864, 8
        %s1866 = scalar_lea.vmem [#allocation10], %s1865
        // Predicated region
        $region57: #{tpu_custom_call.1} parent=39 // pred_check
          %p1867 = pneg %p157
        $region58: #{tpu_custom_call.1} parent=39 // pred_check_branch
          %1869 = sbr.rel (%p1867) target = $region60
        $region59: #{tpu_custom_call.1} parent=39 // pred_region
          %s1871 = ssub.s32 128, 128
          %1872 = vsyncadd %s1863, %s1871
          %s1873 = smul.addr %s24, 128
          %s1874 = scalar_lea.hbm %s5, %s1873
          %s1876 = sshll.u32 %s1866, 4
          %s1877 = int_to_ptr.vmem [resolvable:$true] %s1876
          %1879 = dma.vmem_to_hbm [thread:$0]  %s1877, 128, %s1874, %s1863
        $region60: #{tpu_custom_call.1} parent=39 // pred_fallthru
          _
      $region40: #{tpu_custom_call.1} parent=5 // pred_fallthru
        _
      %p1880 = scmp.le.s32.totalorder 2, %s19
      // Predicated region
      $region61: #{tpu_custom_call.1} parent=5 // pred_check
        %p1881 = pneg %p1880
      $region62: #{tpu_custom_call.1} parent=5 // pred_check_branch
        %1883 = sbr.rel (%p1881) target = $region64
      $region63: #{tpu_custom_call.1} parent=5 // pred_region
        %s1884 = ssub.s32 %s19, 2
        // Predicated region
        $region65: #{tpu_custom_call.1} parent=63 // pred_check
          %p1885 = pneg %p163
        $region66: #{tpu_custom_call.1} parent=63 // pred_check_branch
          %1887 = sbr.rel (%p1885) target = $region68
        $region67: #{tpu_custom_call.1} parent=63 // pred_region
          %s1888 = sand.u32 %s148, 1
          %s1889 = scalar_lea.sflag [#allocation4], %s1888
          %s1890 = sand.u32 %s148, 1
          %s1891 = smul.addr %s1890, 8
          %s1892 = scalar_lea.vmem [#allocation10], %s1891
          %1893 = dma.done %s1889, 128
        $region68: #{tpu_custom_call.1} parent=63 // pred_fallthru
          _
      $region64: #{tpu_custom_call.1} parent=5 // pred_fallthru
        _
    $region6: #{tpu_custom_call.1} parent=1 // loop_footer
      %s23 = sadd.s32 1, %s19
    $region7: #{tpu_custom_call.1} parent=1 // loop_footer_branch
      %18 = sbr.rel target = $region3
    $region8: #{tpu_custom_call.1} parent=1 // loop_exit
      _
    %1894 = vsyncpa [#allocation3], 1
    %s1895 = scalar_lea.sflag [#allocation3], 1
    %1896 = vsyncpa %s1895, 1
    %1897 = vsyncpa [#allocation6], 1
    %1898 = vsyncpa [#allocation9], 1
    %s1899 = scalar_lea.sflag [#allocation9], 1
    %1900 = vsyncpa %s1899, 1
    %1901 = vsyncpa [#allocation4], 1
    %s1902 = scalar_lea.sflag [#allocation4], 1
    %1903 = vsyncpa %s1902, 1

</llo_original>
